<compile_context>
chip_gen: v7x
topology: tpu7x:2x2x1
jax: 0.10.0
libtpu: 0.0.40
codegen_flags: <defaults>
</compile_context>

<pallas_src>
import functools

import jax
import jax.numpy as jnp
from jax.experimental import pallas as pl
from jax.experimental.pallas import tpu as pltpu


def _round_up(x, m):
    return ((x + m - 1) // m) * m


def _step_vmem_bytes(th, wp, wo, c, o, k, dt_bytes):
    """Rough per-grid-step VMEM working set (double-buffered blocks + temporaries)."""
    hh = max(k - 1, 1)
    in_blocks = 2 * (th * wp * c + hh * wp * c) * dt_bytes      # double-buffered inputs
    out_blocks = 2 * th * wo * o * dt_bytes                     # double-buffered output
    tmp = ((th + k - 1) * wp * c * dt_bytes                     # concatenated main+halo tile
           + (th + k - 1) * wo * c * 4                          # f32 kw slab
           + th * wo * c * 4                                    # f32 depthwise accumulator
           + th * wo * c * dt_bytes                             # matmul lhs copy (worst case)
           + th * wo * o * 4)                                   # f32 matmul result
    params = (k * k * c + c + c * o + o) * 4
    return in_blocks + out_blocks + tmp + params


def _pick_tile_h(ho, wp, wo, c, o, k, dt_bytes, budget_bytes=12 * 2 ** 20):
    th = min(ho, 512)
    while th > 8 and _step_vmem_bytes(th, wp, wo, c, o, k, dt_bytes) > budget_bytes:
        th = max(8, th // 2)
    return max(1, th)


def _dwpw_kernel(xm_ref, xh_ref, wdw_ref, bdw_ref, wpw_ref, bpw_ref, o_ref, *, K, TH, Wo):
    """One (batch, row-tile) step: depthwise KxK conv + pointwise 1x1 conv.

    xm_ref : (TH, Wp, C)    main input rows of this tile (channels-last; C on lanes)
    xh_ref : (Hh, Wp, C)    halo rows (the K-1 rows directly below the tile)
    wdw_ref: (K*K, C) f32   depthwise taps, lane-dense rows (tap = kh*K + kw)
    bdw_ref: (1, C)   f32   depthwise bias
    wpw_ref: (C, O)         pointwise 1x1 weights (input dtype; bf16 hits the bf16 MXU)
    bpw_ref: (1, O)   f32   pointwise bias
    o_ref  : (TH, Wo, O)    lane-dense output tile
    """
    C = xm_ref.shape[-1]
    O = wpw_ref.shape[-1]

    # Stitch the halo below the main rows (leading-dim concat: cheap, aligned).
    if K > 1:
        x_tile = jnp.concatenate([xm_ref[...], xh_ref[: K - 1]], axis=0)   # (TH+K-1, Wp, C)
    else:
        x_tile = xm_ref[...]

    # ---- depthwise KxK: f32 math, converts hoisted to one per kw slab ----
    acc = jnp.zeros((TH, Wo, C), jnp.float32)
    for kw in range(K):
        slab = x_tile[:, kw:kw + Wo, :].astype(jnp.float32)                # (TH+K-1, Wo, C)
        for kh in range(K):
            tap = kh * K + kw
            w_tap = wdw_ref[tap:tap + 1, :]                                # (1, C) f32 lane row
            acc = acc + slab[kh:kh + TH] * w_tap
    acc = acc + bdw_ref[...]                                               # (1, C) broadcast

    # ---- pointwise 1x1 on the MXU: (TH*Wo, C) @ (C, O) ----
    # Wo is padded to a multiple of 8 in the wrapper, so this reshape is a free relayout.
    lhs = acc.reshape(TH * Wo, C)
    if wpw_ref.dtype == jnp.bfloat16:
        lhs = lhs.astype(jnp.bfloat16)          # bf16 MXU path when the model runs in bf16
    out = jnp.dot(lhs, wpw_ref[...], preferred_element_type=jnp.float32)
    out = out + bpw_ref[...]                                               # (1, O) broadcast
    o_ref[...] = out.reshape(TH, Wo, O).astype(o_ref.dtype)


def depthwise_conv2d_block(x, w_dw, b_dw, w_pw, b_pw, *, kernel_rad, pad_type="none",
                           tile_h=None):
    """Forward of DepthwiseConv2DBlock.

    x    : (B, C, H, W)   NCHW, like the PyTorch module
    w_dw : (C, 1, K, K)   nn.Conv2d(in_dim, in_dim, K, groups=in_dim).weight
    b_dw : (C,)
    w_pw : (O, C, 1, 1)   nn.Conv2d(in_dim, out_dim, 1).weight
    b_pw : (O,)
    """
    B, C, H, W = x.shape
    K = 2 * kernel_rad + 1
    O = w_pw.shape[0]
    dt = x.dtype
    dt_bytes = jnp.dtype(dt).itemsize

    # channels-last so C / O ride the 128-lane axis inside the kernel
    xt = jnp.transpose(x, (0, 2, 3, 1))                                    # (B, H, W, C)

    # Semantic padding is done once in the wrapper for every mode (review: the fused
    # in-kernel zero-pad cost more VMEM passes than the few extra HBM bytes it saved).
    if pad_type == "zero":
        xt = jnp.pad(xt, ((0, 0), (kernel_rad,) * 2, (kernel_rad,) * 2, (0, 0)))
    elif pad_type == "replicate":
        xt = jnp.pad(xt, ((0, 0), (kernel_rad,) * 2, (kernel_rad,) * 2, (0, 0)), mode="edge")
    elif pad_type == "reflect":
        xt = jnp.pad(xt, ((0, 0), (kernel_rad,) * 2, (kernel_rad,) * 2, (0, 0)), mode="reflect")
    elif pad_type != "none":
        raise ValueError(f"Wrong padding type: {pad_type}")

    Hin, Win = xt.shape[1], xt.shape[2]
    Ho, Wo = Hin - K + 1, Win - K + 1
    if Ho <= 0 or Wo <= 0:
        raise ValueError("spatial dims too small for the kernel size")

    # Pad Wo up to a sublane multiple -> free (TH*Wo, C) reshape before the MXU.
    Wo_p = _round_up(Wo, 8)
    Wp_p = Wo_p + K - 1

    # Row tile + pad Ho up to a whole number of tiles (extra rows are sliced off below).
    if tile_h is None:
        tile_h = _pick_tile_h(Ho, Wp_p, Wo_p, C, O, K, dt_bytes)
    TH = max(1, min(int(tile_h), Ho))
    n_t = pl.cdiv(Ho, TH)
    Ho_p = n_t * TH
    Hh = max(K - 1, 1)
    Hp_p = Ho_p + Hh

    xp = jnp.pad(xt, ((0, 0), (0, Hp_p - Hin), (0, Wp_p - Win), (0, 0)))   # (B, Hp_p, Wp_p, C)

    # Main rows: free reshape into (B, n_t, TH, Wp_p, C).  Halo rows: tiny gathered side
    # array (K-1 rows per tile), so the kernel only needs plain Blocked specs.
    x_main = xp[:, :Ho_p].reshape(B, n_t, TH, Wp_p, C)
    x_halo = jnp.stack(
        [xp[:, (i + 1) * TH:(i + 1) * TH + Hh] for i in range(n_t)], axis=1
    )                                                                      # (B, n_t, Hh, Wp_p, C)

    # lane-dense parameter layouts; depthwise params in f32 (f32 VPU math everywhere)
    wdw = jnp.transpose(w_dw.reshape(C, K * K), (1, 0)).astype(jnp.float32)  # (K*K, C)
    bdw = b_dw.reshape(1, C).astype(jnp.float32)                             # (1, C)
    wpw = jnp.transpose(w_pw.reshape(O, C), (1, 0)).astype(dt)               # (C, O)
    bpw = b_pw.reshape(1, O).astype(jnp.float32)                             # (1, O)
    # NOTE: for real models, padding C/O up to 128 lanes avoids masked vst partial stores;
    # left as-is here since test dims are tiny and real dims are usually lane multiples.

    kernel = functools.partial(_dwpw_kernel, K=K, TH=TH, Wo=Wo_p)

    est = _step_vmem_bytes(TH, Wp_p, Wo_p, C, O, K, dt_bytes)
    # Generation-aware cap: never ask for more than 32 MiB of scoped VMEM (fits v7x's
    # 64 MiB physical with headroom; v5e/v6e have 128 MiB).
    vmem_limit = int(min(32 * 2 ** 20, max(8 * 2 ** 20, 2 * est)))

    out = pl.pallas_call(
        kernel,
        out_shape=jax.ShapeDtypeStruct((B, Ho_p, Wo_p, O), dt),
        grid=(B, n_t),
        in_specs=[
            pl.BlockSpec((None, None, TH, Wp_p, C), lambda b, i: (b, i, 0, 0, 0)),
            pl.BlockSpec((None, None, Hh, Wp_p, C), lambda b, i: (b, i, 0, 0, 0)),
            pl.BlockSpec((K * K, C), lambda b, i: (0, 0)),
            pl.BlockSpec((1, C), lambda b, i: (0, 0)),
            pl.BlockSpec((C, O), lambda b, i: (0, 0)),
            pl.BlockSpec((1, O), lambda b, i: (0, 0)),
        ],
        out_specs=pl.BlockSpec((None, TH, Wo_p, O), lambda b, i: (b, i, 0, 0)),
        compiler_params=pltpu.CompilerParams(
            dimension_semantics=("parallel", "parallel"),
            vmem_limit_bytes=vmem_limit,
        ),
    )(x_main, x_halo, wdw, bdw, wpw, bpw)

    # (B, Ho_p, Wo_p, O) -> drop tiling pad -> NCHW
    out = out[:, :Ho, :Wo, :]
    return jnp.transpose(out, (0, 3, 1, 2))


def _reference(x, w_dw, b_dw, w_pw, b_pw, *, kernel_rad, pad_type):
    """Pure-JAX reference (mirrors nn.Conv2d semantics)."""
    pad_mode = {"zero": "constant", "replicate": "edge", "reflect": "reflect"}.get(pad_type)
    if pad_mode is not None:
        x = jnp.pad(x, ((0, 0), (0, 0), (kernel_rad,) * 2, (kernel_rad,) * 2), mode=pad_mode)
    C = x.shape[1]
    dw = jax.lax.conv_general_dilated(
        x, w_dw, window_strides=(1, 1), padding="VALID",
        dimension_numbers=("NCHW", "OIHW", "NCHW"), feature_group_count=C)
    dw = dw + b_dw.reshape(1, -1, 1, 1)
    pw = jax.lax.conv_general_dilated(
        dw, w_pw, window_strides=(1, 1), padding="VALID",
        dimension_numbers=("NCHW", "OIHW", "NCHW"))
    return pw + b_pw.reshape(1, -1, 1, 1)


if __name__ == "__main__":
    B, C_in, C_out, H, W = 2, 4, 8, 16, 16
    kernel_rad = 1
    K = 2 * kernel_rad + 1

    key = jax.random.PRNGKey(0)
    kx, kdw, kpw, kbd, kbp = jax.random.split(key, 5)

    x = jax.random.normal(kx, (B, C_in, H, W), dtype=jnp.float32)

    # Variance-scaling-style init for weights; small nonzero biases to exercise both
    # bias paths (the module zeroes them at init; values are arbitrary post-training).
    fan_in_dw = 1 * K * K
    w_dw = jax.random.normal(kdw, (C_in, 1, K, K), jnp.float32) * (1.0 / fan_in_dw) ** 0.5
    b_dw = 0.1 * jax.random.normal(kbd, (C_in,), jnp.float32)
    fan_in_pw = C_in
    w_pw = jax.random.normal(kpw, (C_out, C_in, 1, 1), jnp.float32) * (1.0 / fan_in_pw) ** 0.5
    b_pw = 0.1 * jax.random.normal(kbp, (C_out,), jnp.float32)

    # tile_h=None -> auto (single tile here); tile_h=8 forces multi-tile + halo + the
    # Ho/Wo tiling-pad path.  All four pad modes are checked against the JAX reference.
    cases = [("zero", None), ("reflect", None), ("replicate", 8), ("none", 8)]
    for pad_type, tile_h in cases:
        out = depthwise_conv2d_block(x, w_dw, b_dw, w_pw, b_pw,
                                     kernel_rad=kernel_rad, pad_type=pad_type,
                                     tile_h=tile_h)
        out = jax.block_until_ready(out)
        ref = _reference(x, w_dw, b_dw, w_pw, b_pw, kernel_rad=kernel_rad, pad_type=pad_type)
        assert out.shape == ref.shape, (pad_type, out.shape, ref.shape)
        err = float(jnp.abs(out - ref).max())
        assert jnp.allclose(out, ref, atol=1e-4, rtol=1e-4), (pad_type, err)

    print("KERNEL_OK")
</pallas_src>

<mosaic_0001>
module attributes {stable_mosaic.version = 11 : i64} {
  func.func @_dwpw_kernel(%arg0: i32, %arg1: i32, %arg2: memref<1x1x16x18x4xf32, #tpu.memory_space<vmem>>, %arg3: memref<1x1x2x18x4xf32, #tpu.memory_space<vmem>>, %arg4: memref<9x4xf32, #tpu.memory_space<vmem>>, %arg5: memref<1x4xf32, #tpu.memory_space<vmem>>, %arg6: memref<4x8xf32, #tpu.memory_space<vmem>>, %arg7: memref<1x8xf32, #tpu.memory_space<vmem>>, %arg8: memref<1x16x16x8xf32, #tpu.memory_space<vmem>>) attributes {dimension_semantics = [#tpu.dimension_semantics<parallel>, #tpu.dimension_semantics<parallel>], iteration_bounds = array<i64: 2, 1>, scalar_prefetch = 0 : i64, scratch_operands = 0 : i64, tpu.core_type = #tpu.core_type<tc>, window_params = [{transform_indices = @transform_0, window_bounds = array<i64: 1, 1, 16, 18, 4>}, {transform_indices = @transform_1, window_bounds = array<i64: 1, 1, 2, 18, 4>}, {pipeline_mode = #tpu.pipeline_mode<synchronous>, transform_indices = @transform_2, window_bounds = array<i64: 9, 4>}, {pipeline_mode = #tpu.pipeline_mode<synchronous>, transform_indices = @transform_3, window_bounds = array<i64: 1, 4>}, {pipeline_mode = #tpu.pipeline_mode<synchronous>, transform_indices = @transform_4, window_bounds = array<i64: 4, 8>}, {pipeline_mode = #tpu.pipeline_mode<synchronous>, transform_indices = @transform_5, window_bounds = array<i64: 1, 8>}, {transform_indices = @transform_6, window_bounds = array<i64: 1, 16, 16, 8>}]} {
    %c0 = arith.constant 0 : index
    %c0_0 = arith.constant 0 : index
    %c0_1 = arith.constant 0 : index
    %c0_2 = arith.constant 0 : index
    %c0_3 = arith.constant 0 : index
    %0 = vector.load %arg2[%c0, %c0_0, %c0_1, %c0_2, %c0_3] : memref<1x1x16x18x4xf32, #tpu.memory_space<vmem>>, vector<1x1x16x18x4xf32>
    %1 = vector.shape_cast %0 : vector<1x1x16x18x4xf32> to vector<16x18x4xf32>
    %c0_4 = arith.constant 0 : index
    %c0_5 = arith.constant 0 : index
    %c0_6 = arith.constant 0 : index
    %c0_7 = arith.constant 0 : index
    %c0_8 = arith.constant 0 : index
    %2 = vector.load %arg3[%c0_4, %c0_5, %c0_6, %c0_7, %c0_8] : memref<1x1x2x18x4xf32, #tpu.memory_space<vmem>>, vector<1x1x2x18x4xf32>
    %3 = vector.shape_cast %2 : vector<1x1x2x18x4xf32> to vector<2x18x4xf32>
    %4 = tpu.concatenate %1, %3 in 0 : vector<16x18x4xf32>, vector<2x18x4xf32> -> vector<18x18x4xf32>
    %cst = arith.constant 0.000000e+00 : f32
    %5 = vector.broadcast %cst : f32 to vector<16x16x4xf32>
    %6 = vector.extract_strided_slice %4 {offsets = [0, 0, 0], sizes = [18, 16, 4], strides = [1, 1, 1]} : vector<18x18x4xf32> to vector<18x16x4xf32>
    %c0_9 = arith.constant 0 : index
    %c0_10 = arith.constant 0 : index
    %7 = vector.load %arg4[%c0_9, %c0_10] : memref<9x4xf32, #tpu.memory_space<vmem>>, vector<1x4xf32>
    %8 = vector.extract_strided_slice %6 {offsets = [0, 0, 0], sizes = [16, 16, 4], strides = [1, 1, 1]} : vector<18x16x4xf32> to vector<16x16x4xf32>
    %9 = vector.shape_cast %7 : vector<1x4xf32> to vector<1x1x4xf32>
    %10 = vector.broadcast %9 : vector<1x1x4xf32> to vector<16x16x4xf32>
    %11 = arith.mulf %8, %10 : vector<16x16x4xf32>
    %12 = arith.addf %5, %11 : vector<16x16x4xf32>
    %c3 = arith.constant 3 : index
    %c0_11 = arith.constant 0 : index
    %13 = vector.load %arg4[%c3, %c0_11] : memref<9x4xf32, #tpu.memory_space<vmem>>, vector<1x4xf32>
    %14 = vector.extract_strided_slice %6 {offsets = [1, 0, 0], sizes = [16, 16, 4], strides = [1, 1, 1]} : vector<18x16x4xf32> to vector<16x16x4xf32>
    %15 = vector.shape_cast %13 : vector<1x4xf32> to vector<1x1x4xf32>
    %16 = vector.broadcast %15 : vector<1x1x4xf32> to vector<16x16x4xf32>
    %17 = arith.mulf %14, %16 : vector<16x16x4xf32>
    %18 = arith.addf %12, %17 : vector<16x16x4xf32>
    %c6 = arith.constant 6 : index
    %c0_12 = arith.constant 0 : index
    %19 = vector.load %arg4[%c6, %c0_12] : memref<9x4xf32, #tpu.memory_space<vmem>>, vector<1x4xf32>
    %20 = vector.extract_strided_slice %6 {offsets = [2, 0, 0], sizes = [16, 16, 4], strides = [1, 1, 1]} : vector<18x16x4xf32> to vector<16x16x4xf32>
    %21 = vector.shape_cast %19 : vector<1x4xf32> to vector<1x1x4xf32>
    %22 = vector.broadcast %21 : vector<1x1x4xf32> to vector<16x16x4xf32>
    %23 = arith.mulf %20, %22 : vector<16x16x4xf32>
    %24 = arith.addf %18, %23 : vector<16x16x4xf32>
    %25 = vector.extract_strided_slice %4 {offsets = [0, 1, 0], sizes = [18, 16, 4], strides = [1, 1, 1]} : vector<18x18x4xf32> to vector<18x16x4xf32>
    %c1 = arith.constant 1 : index
    %c0_13 = arith.constant 0 : index
    %26 = vector.load %arg4[%c1, %c0_13] : memref<9x4xf32, #tpu.memory_space<vmem>>, vector<1x4xf32>
    %27 = vector.extract_strided_slice %25 {offsets = [0, 0, 0], sizes = [16, 16, 4], strides = [1, 1, 1]} : vector<18x16x4xf32> to vector<16x16x4xf32>
    %28 = vector.shape_cast %26 : vector<1x4xf32> to vector<1x1x4xf32>
    %29 = vector.broadcast %28 : vector<1x1x4xf32> to vector<16x16x4xf32>
    %30 = arith.mulf %27, %29 : vector<16x16x4xf32>
    %31 = arith.addf %24, %30 : vector<16x16x4xf32>
    %c4 = arith.constant 4 : index
    %c0_14 = arith.constant 0 : index
    %32 = vector.load %arg4[%c4, %c0_14] : memref<9x4xf32, #tpu.memory_space<vmem>>, vector<1x4xf32>
    %33 = vector.extract_strided_slice %25 {offsets = [1, 0, 0], sizes = [16, 16, 4], strides = [1, 1, 1]} : vector<18x16x4xf32> to vector<16x16x4xf32>
    %34 = vector.shape_cast %32 : vector<1x4xf32> to vector<1x1x4xf32>
    %35 = vector.broadcast %34 : vector<1x1x4xf32> to vector<16x16x4xf32>
    %36 = arith.mulf %33, %35 : vector<16x16x4xf32>
    %37 = arith.addf %31, %36 : vector<16x16x4xf32>
    %c7 = arith.constant 7 : index
    %c0_15 = arith.constant 0 : index
    %38 = vector.load %arg4[%c7, %c0_15] : memref<9x4xf32, #tpu.memory_space<vmem>>, vector<1x4xf32>
    %39 = vector.extract_strided_slice %25 {offsets = [2, 0, 0], sizes = [16, 16, 4], strides = [1, 1, 1]} : vector<18x16x4xf32> to vector<16x16x4xf32>
    %40 = vector.shape_cast %38 : vector<1x4xf32> to vector<1x1x4xf32>
    %41 = vector.broadcast %40 : vector<1x1x4xf32> to vector<16x16x4xf32>
    %42 = arith.mulf %39, %41 : vector<16x16x4xf32>
    %43 = arith.addf %37, %42 : vector<16x16x4xf32>
    %44 = vector.extract_strided_slice %4 {offsets = [0, 2, 0], sizes = [18, 16, 4], strides = [1, 1, 1]} : vector<18x18x4xf32> to vector<18x16x4xf32>
    %c2 = arith.constant 2 : index
    %c0_16 = arith.constant 0 : index
    %45 = vector.load %arg4[%c2, %c0_16] : memref<9x4xf32, #tpu.memory_space<vmem>>, vector<1x4xf32>
    %46 = vector.extract_strided_slice %44 {offsets = [0, 0, 0], sizes = [16, 16, 4], strides = [1, 1, 1]} : vector<18x16x4xf32> to vector<16x16x4xf32>
    %47 = vector.shape_cast %45 : vector<1x4xf32> to vector<1x1x4xf32>
    %48 = vector.broadcast %47 : vector<1x1x4xf32> to vector<16x16x4xf32>
    %49 = arith.mulf %46, %48 : vector<16x16x4xf32>
    %50 = arith.addf %43, %49 : vector<16x16x4xf32>
    %c5 = arith.constant 5 : index
    %c0_17 = arith.constant 0 : index
    %51 = vector.load %arg4[%c5, %c0_17] : memref<9x4xf32, #tpu.memory_space<vmem>>, vector<1x4xf32>
    %52 = vector.extract_strided_slice %44 {offsets = [1, 0, 0], sizes = [16, 16, 4], strides = [1, 1, 1]} : vector<18x16x4xf32> to vector<16x16x4xf32>
    %53 = vector.shape_cast %51 : vector<1x4xf32> to vector<1x1x4xf32>
    %54 = vector.broadcast %53 : vector<1x1x4xf32> to vector<16x16x4xf32>
    %55 = arith.mulf %52, %54 : vector<16x16x4xf32>
    %56 = arith.addf %50, %55 : vector<16x16x4xf32>
    %c8 = arith.constant 8 : index
    %c0_18 = arith.constant 0 : index
    %57 = vector.load %arg4[%c8, %c0_18] : memref<9x4xf32, #tpu.memory_space<vmem>>, vector<1x4xf32>
    %58 = vector.extract_strided_slice %44 {offsets = [2, 0, 0], sizes = [16, 16, 4], strides = [1, 1, 1]} : vector<18x16x4xf32> to vector<16x16x4xf32>
    %59 = vector.shape_cast %57 : vector<1x4xf32> to vector<1x1x4xf32>
    %60 = vector.broadcast %59 : vector<1x1x4xf32> to vector<16x16x4xf32>
    %61 = arith.mulf %58, %60 : vector<16x16x4xf32>
    %62 = arith.addf %56, %61 : vector<16x16x4xf32>
    %c0_19 = arith.constant 0 : index
    %c0_20 = arith.constant 0 : index
    %63 = vector.load %arg5[%c0_19, %c0_20] : memref<1x4xf32, #tpu.memory_space<vmem>>, vector<1x4xf32>
    %64 = vector.shape_cast %63 : vector<1x4xf32> to vector<1x1x4xf32>
    %65 = vector.broadcast %64 : vector<1x1x4xf32> to vector<16x16x4xf32>
    %66 = arith.addf %62, %65 : vector<16x16x4xf32>
    %67 = vector.shape_cast %66 : vector<16x16x4xf32> to vector<256x4xf32>
    %c0_21 = arith.constant 0 : index
    %c0_22 = arith.constant 0 : index
    %68 = vector.load %arg6[%c0_21, %c0_22] : memref<4x8xf32, #tpu.memory_space<vmem>>, vector<4x8xf32>
    %cst_23 = arith.constant dense<0.000000e+00> : vector<256x8xf32>
    %69 = tpu.matmul %67, %68, %cst_23 {dimension_numbers = #tpu.dot_dimension_numbers<[1], [0], [0], [1], [0, 0, 1, 1], [], []>} : vector<256x4xf32>, vector<4x8xf32>, vector<256x8xf32> -> vector<256x8xf32>
    %c0_24 = arith.constant 0 : index
    %c0_25 = arith.constant 0 : index
    %70 = vector.load %arg7[%c0_24, %c0_25] : memref<1x8xf32, #tpu.memory_space<vmem>>, vector<1x8xf32>
    %71 = vector.broadcast %70 : vector<1x8xf32> to vector<256x8xf32>
    %72 = arith.addf %69, %71 : vector<256x8xf32>
    %73 = vector.shape_cast %72 : vector<256x8xf32> to vector<16x16x8xf32>
    %c0_26 = arith.constant 0 : index
    %c0_27 = arith.constant 0 : index
    %c0_28 = arith.constant 0 : index
    %c0_29 = arith.constant 0 : index
    %74 = vector.load %arg8[%c0_26, %c0_27, %c0_28, %c0_29] : memref<1x16x16x8xf32, #tpu.memory_space<vmem>>, vector<1x16x16x8xf32>
    %75 = vector.shape_cast %74 : vector<1x16x16x8xf32> to vector<16x16x8xf32>
    %76 = vector.shape_cast %73 : vector<16x16x8xf32> to vector<1x16x16x8xf32>
    tpu.vector_store %arg8[%c0_26, %c0_27, %c0_28, %c0_29], %76 {strides = array<i32>} : memref<1x16x16x8xf32, #tpu.memory_space<vmem>>, vector<1x16x16x8xf32>,
    return
  }
  func.func @transform_0(%arg0: i32, %arg1: i32) -> (i32, i32, i32, i32, i32) {
    %c0_i32 = arith.constant 0 : i32
    %c0_i32_0 = arith.constant 0 : i32
    %c0_i32_1 = arith.constant 0 : i32
    %c0_i32_2 = arith.constant 0 : i32
    return %arg0, %arg1, %c0_i32, %c0_i32_0, %c0_i32_1 : i32, i32, i32, i32, i32
  }
  func.func @transform_1(%arg0: i32, %arg1: i32) -> (i32, i32, i32, i32, i32) {
    %c0_i32 = arith.constant 0 : i32
    %c0_i32_0 = arith.constant 0 : i32
    %c0_i32_1 = arith.constant 0 : i32
    %c0_i32_2 = arith.constant 0 : i32
    return %arg0, %arg1, %c0_i32, %c0_i32_0, %c0_i32_1 : i32, i32, i32, i32, i32
  }
  func.func @transform_2(%arg0: i32, %arg1: i32) -> (i32, i32) {
    %c0_i32 = arith.constant 0 : i32
    %c0_i32_0 = arith.constant 0 : i32
    %c0_i32_1 = arith.constant 0 : i32
    return %c0_i32, %c0_i32_0 : i32, i32
  }
  func.func @transform_3(%arg0: i32, %arg1: i32) -> (i32, i32) {
    %c0_i32 = arith.constant 0 : i32
    %c0_i32_0 = arith.constant 0 : i32
    %c0_i32_1 = arith.constant 0 : i32
    return %c0_i32, %c0_i32_0 : i32, i32
  }
  func.func @transform_4(%arg0: i32, %arg1: i32) -> (i32, i32) {
    %c0_i32 = arith.constant 0 : i32
    %c0_i32_0 = arith.constant 0 : i32
    %c0_i32_1 = arith.constant 0 : i32
    return %c0_i32, %c0_i32_0 : i32, i32
  }
  func.func @transform_5(%arg0: i32, %arg1: i32) -> (i32, i32) {
    %c0_i32 = arith.constant 0 : i32
    %c0_i32_0 = arith.constant 0 : i32
    %c0_i32_1 = arith.constant 0 : i32
    return %c0_i32, %c0_i32_0 : i32, i32
  }
  func.func @transform_6(%arg0: i32, %arg1: i32) -> (i32, i32, i32, i32) {
    %c0_i32 = arith.constant 0 : i32
    %c0_i32_0 = arith.constant 0 : i32
    %c0_i32_1 = arith.constant 0 : i32
    return %arg0, %arg1, %c0_i32, %c0_i32_0 : i32, i32, i32, i32
  }
}

</mosaic_0001>

<llo_original>
// kernel: tpu_custom_call.1
$region0: #{tpu_custom_call.1}
  #allocation0 [shape = 'u32[]', space=smem, size = 0x4, offset = 0x4, fixed_abs, tag = 'smem constant byte address 0x4 - core index']
  #allocation1 [shape = 'u32[144,128]{1,0:T(1,128)}', space=vmem, size = 0x12000, scoped, tag = 'internal scratch']
  %s0 = inlined_call_operand.vmem [shape: f32[2,1,16,18,4], index: 0, kind: input, shape index: {}]
  %s1 = inlined_call_operand.vmem [shape: f32[2,1,2,18,4], index: 1, kind: input, shape index: {}]
  %s2 = inlined_call_operand.vmem [shape: f32[9,4], index: 2, kind: input, shape index: {}]
  %s3 = inlined_call_operand.vmem [shape: f32[1,4], index: 3, kind: input, shape index: {}]
  %s4 = inlined_call_operand.vmem [shape: f32[4,8], index: 4, kind: input, shape index: {}]
  %s5 = inlined_call_operand.vmem [shape: f32[1,8], index: 5, kind: input, shape index: {}]
  %s6 = inlined_call_operand.vmem [shape: f32[2,16,16,8], index: 6, kind: output, shape index: {}]
  %s7 = sld [smem:[#allocation0]]
  $region57: #{tpu_custom_call.1} parent=0
    _
  %s9 = ssub.s32 1, %s7
  %s10 = scalar_select 0, %s9, %s7
  loop: start=0, step=1, limit=4
  $region2: #{tpu_custom_call.1} parent=0 // loop_pre_header
    _
  $region3: #{tpu_custom_call.1} parent=0 // loop_header
    %s12 = sphi 0, %s16
    %p13 = scmp.ge.s32.totalorder %s12, 4
    %s19 = sphi 0, %s31
    %s20 = sphi 0, %s27
    %s21 = sphi 0, %s19
    %s22 = sphi 0, %s20
    %s23 = sphi 0, %s21
    %s24 = sphi 0, %s22
    %s36 = sphi 0, %s38
    %s39 = sphi 0, %s36
    %s40 = sphi 0, %s39
    %s56 = sphi 0, %s40
    %s64 = sphi 0, %s66
    %s67 = sphi 0, %s64
    %s68 = sphi 0, %s67
    %s84 = sphi 0, %s68
    %s88 = sphi 0, %s88
    %s90 = sphi 0, %s88
    %s91 = sphi 0, %s90
    %s105 = sphi 0, %s91
    %s109 = sphi 0, %s109
    %s111 = sphi 0, %s109
    %s112 = sphi 0, %s111
    %s126 = sphi 0, %s112
    %s130 = sphi 0, %s130
    %s132 = sphi 0, %s130
    %s133 = sphi 0, %s132
    %s147 = sphi 0, %s133
    %s151 = sphi 0, %s151
    %s153 = sphi 0, %s151
    %s154 = sphi 0, %s153
    %s168 = sphi 0, %s154
    %s176 = sphi 0, %s178
    %s179 = sphi 0, %s176
    %s180 = sphi 0, %s179
    %s196 = sphi 0, %s180
  $region4: #{tpu_custom_call.1} parent=0 // loop_header_branch
    %15 = sbr.rel (%p13) target = $region8
  $region5: #{tpu_custom_call.1} parent=0 // loop_body
    %s17 = ssub.s32 %s12, 1
    %s18 = ssub.s32 %s12, 2
    %s25 = sadd.s32 1, %s20
    %p26 = scmp.ge.s32.totalorder %s25, 1
    %s27 = scalar_select %p26, 0, %s25
    %s28 = sadd.s32 1, %s19
    %s29 = scalar_select %p26, %s28, %s19
    %p30 = scmp.ge.s32.totalorder %s29, 2
    %s31 = scalar_select %p30, 0, %s29
    %s32 = ssub.s32 %s19, %s31
    %s33 = ssub.s32 %s20, %s27
    %s34 = sor.u32 %s32, %s33
    %p35 = scmp.eq.s32.totalorder %s34, 0
    %s37 = sadd.s32 %s36, 1
    %s38 = scalar_select %p35, %s36, %s37
    %p41 = pneg %p35
    %p42 = scmp.eq.s32.totalorder %s12, 1
    %p43 = por %p41, %p42
    %p44 = scmp.ne.s32.totalorder %s36, %s39
    %p45 = scmp.eq.s32.totalorder %s12, 0
    %p46 = por %p44, %p45
    %p47 = scmp.ne.s32.totalorder %s36, %s39
    %p48 = scmp.eq.s32.totalorder %s17, 1
    %p49 = por %p47, %p48
    %p50 = scmp.ne.s32.totalorder %s39, %s40
    %p51 = scmp.eq.s32.totalorder %s17, 0
    %p52 = por %p50, %p51
    %p53 = scmp.ne.s32.totalorder %s39, %s40
    %p54 = scmp.eq.s32.totalorder %s18, 1
    %p55 = por %p53, %p54
    %p57 = scmp.ne.s32.totalorder %s40, %s56
    %p58 = scmp.eq.s32.totalorder %s18, 0
    %p59 = por %p57, %p58
    %s60 = ssub.s32 %s19, %s31
    %s61 = ssub.s32 %s20, %s27
    %s62 = sor.u32 %s60, %s61
    %p63 = scmp.eq.s32.totalorder %s62, 0
    %s65 = sadd.s32 %s64, 1
    %s66 = scalar_select %p63, %s64, %s65
    %p69 = pneg %p63
    %p70 = scmp.eq.s32.totalorder %s12, 1
    %p71 = por %p69, %p70
    %p72 = scmp.ne.s32.totalorder %s64, %s67
    %p73 = scmp.eq.s32.totalorder %s12, 0
    %p74 = por %p72, %p73
    %p75 = scmp.ne.s32.totalorder %s64, %s67
    %p76 = scmp.eq.s32.totalorder %s17, 1
    %p77 = por %p75, %p76
    %p78 = scmp.ne.s32.totalorder %s67, %s68
    %p79 = scmp.eq.s32.totalorder %s17, 0
    %p80 = por %p78, %p79
    %p81 = scmp.ne.s32.totalorder %s67, %s68
    %p82 = scmp.eq.s32.totalorder %s18, 1
    %p83 = por %p81, %p82
    %p85 = scmp.ne.s32.totalorder %s68, %s84
    %p86 = scmp.eq.s32.totalorder %s18, 0
    %p87 = por %p85, %p86
    %s89 = sadd.s32 %s88, 1
    %p92 = scmp.eq.s32.totalorder %s12, 1
    %p93 = scmp.ne.s32.totalorder %s88, %s90
    %p94 = scmp.eq.s32.totalorder %s12, 0
    %p95 = por %p93, %p94
    %p96 = scmp.ne.s32.totalorder %s88, %s90
    %p97 = scmp.eq.s32.totalorder %s17, 1
    %p98 = por %p96, %p97
    %p99 = scmp.ne.s32.totalorder %s90, %s91
    %p100 = scmp.eq.s32.totalorder %s17, 0
    %p101 = por %p99, %p100
    %p102 = scmp.ne.s32.totalorder %s90, %s91
    %p103 = scmp.eq.s32.totalorder %s18, 1
    %p104 = por %p102, %p103
    %p106 = scmp.ne.s32.totalorder %s91, %s105
    %p107 = scmp.eq.s32.totalorder %s18, 0
    %p108 = por %p106, %p107
    %s110 = sadd.s32 %s109, 1
    %p113 = scmp.eq.s32.totalorder %s12, 1
    %p114 = scmp.ne.s32.totalorder %s109, %s111
    %p115 = scmp.eq.s32.totalorder %s12, 0
    %p116 = por %p114, %p115
    %p117 = scmp.ne.s32.totalorder %s109, %s111
    %p118 = scmp.eq.s32.totalorder %s17, 1
    %p119 = por %p117, %p118
    %p120 = scmp.ne.s32.totalorder %s111, %s112
    %p121 = scmp.eq.s32.totalorder %s17, 0
    %p122 = por %p120, %p121
    %p123 = scmp.ne.s32.totalorder %s111, %s112
    %p124 = scmp.eq.s32.totalorder %s18, 1
    %p125 = por %p123, %p124
    %p127 = scmp.ne.s32.totalorder %s112, %s126
    %p128 = scmp.eq.s32.totalorder %s18, 0
    %p129 = por %p127, %p128
    %s131 = sadd.s32 %s130, 1
    %p134 = scmp.eq.s32.totalorder %s12, 1
    %p135 = scmp.ne.s32.totalorder %s130, %s132
    %p136 = scmp.eq.s32.totalorder %s12, 0
    %p137 = por %p135, %p136
    %p138 = scmp.ne.s32.totalorder %s130, %s132
    %p139 = scmp.eq.s32.totalorder %s17, 1
    %p140 = por %p138, %p139
    %p141 = scmp.ne.s32.totalorder %s132, %s133
    %p142 = scmp.eq.s32.totalorder %s17, 0
    %p143 = por %p141, %p142
    %p144 = scmp.ne.s32.totalorder %s132, %s133
    %p145 = scmp.eq.s32.totalorder %s18, 1
    %p146 = por %p144, %p145
    %p148 = scmp.ne.s32.totalorder %s133, %s147
    %p149 = scmp.eq.s32.totalorder %s18, 0
    %p150 = por %p148, %p149
    %s152 = sadd.s32 %s151, 1
    %p155 = scmp.eq.s32.totalorder %s12, 1
    %p156 = scmp.ne.s32.totalorder %s151, %s153
    %p157 = scmp.eq.s32.totalorder %s12, 0
    %p158 = por %p156, %p157
    %p159 = scmp.ne.s32.totalorder %s151, %s153
    %p160 = scmp.eq.s32.totalorder %s17, 1
    %p161 = por %p159, %p160
    %p162 = scmp.ne.s32.totalorder %s153, %s154
    %p163 = scmp.eq.s32.totalorder %s17, 0
    %p164 = por %p162, %p163
    %p165 = scmp.ne.s32.totalorder %s153, %s154
    %p166 = scmp.eq.s32.totalorder %s18, 1
    %p167 = por %p165, %p166
    %p169 = scmp.ne.s32.totalorder %s154, %s168
    %p170 = scmp.eq.s32.totalorder %s18, 0
    %p171 = por %p169, %p170
    %s172 = ssub.s32 %s19, %s31
    %s173 = ssub.s32 %s20, %s27
    %s174 = sor.u32 %s172, %s173
    %p175 = scmp.eq.s32.totalorder %s174, 0
    %s177 = sadd.s32 %s176, 1
    %s178 = scalar_select %p175, %s176, %s177
    %p181 = pneg %p175
    %p182 = scmp.eq.s32.totalorder %s12, 1
    %p183 = por %p181, %p182
    %p184 = scmp.ne.s32.totalorder %s176, %s179
    %p185 = scmp.eq.s32.totalorder %s12, 0
    %p186 = por %p184, %p185
    %p187 = scmp.ne.s32.totalorder %s176, %s179
    %p188 = scmp.eq.s32.totalorder %s17, 1
    %p189 = por %p187, %p188
    %p190 = scmp.ne.s32.totalorder %s179, %s180
    %p191 = scmp.eq.s32.totalorder %s17, 0
    %p192 = por %p190, %p191
    %p193 = scmp.ne.s32.totalorder %s179, %s180
    %p194 = scmp.eq.s32.totalorder %s18, 1
    %p195 = por %p193, %p194
    %p197 = scmp.ne.s32.totalorder %s180, %s196
    %p198 = scmp.eq.s32.totalorder %s18, 0
    %p199 = por %p197, %p198
    %p200 = scmp.le.s32.totalorder 1, %s12
    %p201 = scmp.lt.s32.totalorder %s12, 3
    %p202 = pnand %p200, %p201
    %p203 = pneg %p202
    // Predicated region
    $region9: #{tpu_custom_call.1} parent=5 // pred_check
      _
    $region10: #{tpu_custom_call.1} parent=5 // pred_check_branch
      %205 = sbr.rel (%p202) target = $region12
    $region11: #{tpu_custom_call.1} parent=5 // pred_region
      %s206 = ssub.s32 %s12, 1
      // Predicated region
      $region13: #{tpu_custom_call.1} parent=11 // pred_check
        %p207 = pneg %p101
      $region14: #{tpu_custom_call.1} parent=11 // pred_check_branch
        %209 = sbr.rel (%p207) target = $region16
      $region15: #{tpu_custom_call.1} parent=11 // pred_region
        _
      $region16: #{tpu_custom_call.1} parent=11 // pred_fallthru
        _
      // Predicated region
      $region17: #{tpu_custom_call.1} parent=11 // pred_check
        %p210 = pneg %p122
      $region18: #{tpu_custom_call.1} parent=11 // pred_check_branch
        %212 = sbr.rel (%p210) target = $region20
      $region19: #{tpu_custom_call.1} parent=11 // pred_region
        _
      $region20: #{tpu_custom_call.1} parent=11 // pred_fallthru
        _
      // Predicated region
      $region21: #{tpu_custom_call.1} parent=11 // pred_check
        %p213 = pneg %p143
      $region22: #{tpu_custom_call.1} parent=11 // pred_check_branch
        %215 = sbr.rel (%p213) target = $region24
      $region23: #{tpu_custom_call.1} parent=11 // pred_region
        _
      $region24: #{tpu_custom_call.1} parent=11 // pred_fallthru
        _
      // Predicated region
      $region25: #{tpu_custom_call.1} parent=11 // pred_check
        %p216 = pneg %p164
      $region26: #{tpu_custom_call.1} parent=11 // pred_check_branch
        %218 = sbr.rel (%p216) target = $region28
      $region27: #{tpu_custom_call.1} parent=11 // pred_region
        _
      $region28: #{tpu_custom_call.1} parent=11 // pred_fallthru
        _
    $region12: #{tpu_custom_call.1} parent=5 // pred_fallthru
      _
    %p219 = scmp.lt.s32.totalorder %s12, 2
    // Predicated region
    $region29: #{tpu_custom_call.1} parent=5 // pred_check
      %p220 = pneg %p219
    $region30: #{tpu_custom_call.1} parent=5 // pred_check_branch
      %222 = sbr.rel (%p220) target = $region32
    $region31: #{tpu_custom_call.1} parent=5 // pred_region
      // Predicated region
      $region33: #{tpu_custom_call.1} parent=31 // pred_check
        %p223 = pneg %p46
      $region34: #{tpu_custom_call.1} parent=31 // pred_check_branch
        %225 = sbr.rel (%p223) target = $region36
      $region35: #{tpu_custom_call.1} parent=31 // pred_region
        %p226 = scmp.lt.s32.totalorder %s19, 1
        %s227 = scalar_select %p226, %s19, 1
        %p228 = scmp.lt.s32.totalorder %s20, 0
        %s229 = scalar_select %p228, %s20, 0
        %s230 = smul.addr %s229, 48
        %s231 = smul.addr %s227, 48
        %s232 = sadd.s32 %s230, %s231
        %s233 = smul.addr %s232, 8
        %s234 = scalar_lea.vmem %s0, %s233
      $region36: #{tpu_custom_call.1} parent=31 // pred_fallthru
        _
      // Predicated region
      $region37: #{tpu_custom_call.1} parent=31 // pred_check
        %p235 = pneg %p74
      $region38: #{tpu_custom_call.1} parent=31 // pred_check_branch
        %237 = sbr.rel (%p235) target = $region40
      $region39: #{tpu_custom_call.1} parent=31 // pred_region
        %p238 = scmp.lt.s32.totalorder %s19, 1
        %s239 = scalar_select %p238, %s19, 1
        %p240 = scmp.lt.s32.totalorder %s20, 0
        %s241 = scalar_select %p240, %s20, 0
        %s242 = smul.addr %s241, 6
        %s243 = smul.addr %s239, 6
        %s244 = sadd.s32 %s242, %s243
        %s245 = smul.addr %s244, 8
        %s246 = scalar_lea.vmem %s1, %s245
      $region40: #{tpu_custom_call.1} parent=31 // pred_fallthru
        _
    $region32: #{tpu_custom_call.1} parent=5 // pred_fallthru
      _
    %p247 = scmp.le.s32.totalorder 1, %s12
    %p248 = scmp.lt.s32.totalorder %s12, 3
    %p249 = pnand %p247, %p248
    %p250 = pneg %p249
    // Predicated region
    $region41: #{tpu_custom_call.1} parent=5 // pred_check
      _
    $region42: #{tpu_custom_call.1} parent=5 // pred_check_branch
      %252 = sbr.rel (%p249) target = $region44
    $region43: #{tpu_custom_call.1} parent=5 // pred_region
      %s253 = ssub.s32 %s12, 1
      %p254 = scmp.lt.s32.totalorder %s21, 1
      %s255 = scalar_select %p254, %s21, 1
      %p256 = scmp.lt.s32.totalorder %s22, 0
      %s257 = scalar_select %p256, %s22, 0
      %s258 = smul.addr %s257, 48
      %s259 = smul.addr %s255, 48
      %s260 = sadd.s32 %s258, %s259
      %s261 = smul.addr %s260, 8
      %s262 = scalar_lea.vmem %s0, %s261
      %p263 = pneg %p52
      %p264 = pneg %p49
      %p265 = scmp.lt.s32.totalorder %s21, 1
      %s266 = scalar_select %p265, %s21, 1
      %p267 = scmp.lt.s32.totalorder %s22, 0
      %s268 = scalar_select %p267, %s22, 0
      %s269 = smul.addr %s268, 6
      %s270 = smul.addr %s266, 6
      %s271 = sadd.s32 %s269, %s270
      %s272 = smul.addr %s271, 8
      %s273 = scalar_lea.vmem %s1, %s272
      %p274 = pneg %p80
      %p275 = pneg %p77
      %p276 = pneg %p101
      %p277 = pneg %p98
      %p278 = pneg %p122
      %p279 = pneg %p119
      %p280 = pneg %p143
      %p281 = pneg %p140
      %p282 = pneg %p164
      %p283 = pneg %p161
      %p284 = pneg %p192
      %p285 = pneg %p189
      %s286 = smul.u32 16, %s22
      %p287 = scmp.lt.s32.totalorder %s21, 1
      %s288 = scalar_select %p287, %s21, 1
      %p289 = scmp.lt.s32.totalorder %s286, 15
      %s290 = scalar_select %p289, %s286, 15
      %s291 = smul.addr %s290, 2
      %s292 = smul.addr %s288, 32
      %s293 = sadd.s32 %s291, %s292
      %s294 = smul.addr %s293, 8
      %s295 = scalar_lea.vmem %s6, %s294
      %p296 = scmp.lt.s32.totalorder %s21, 1
      %s297 = scalar_select %p296, %s21, 1
      %p298 = scmp.lt.s32.totalorder %s22, 0
      %s299 = scalar_select %p298, %s22, 0
      %s300 = smul.addr %s299, 48
      %s301 = smul.addr %s297, 48
      %s302 = sadd.s32 %s300, %s301
      %s303 = smul.addr %s302, 8
      %s304 = scalar_lea.vmem %s0, %s303
      %p305 = scmp.lt.s32.totalorder %s21, 1
      %s306 = scalar_select %p305, %s21, 1
      %p307 = scmp.lt.s32.totalorder %s22, 0
      %s308 = scalar_select %p307, %s22, 0
      %s309 = smul.addr %s308, 6
      %s310 = smul.addr %s306, 6
      %s311 = sadd.s32 %s309, %s310
      %s312 = smul.addr %s311, 8
      %s313 = scalar_lea.vmem %s1, %s312
      %s314 = smul.u32 16, %s22
      %p315 = scmp.lt.s32.totalorder %s21, 1
      %s316 = scalar_select %p315, %s21, 1
      %p317 = scmp.lt.s32.totalorder %s314, 15
      %s318 = scalar_select %p317, %s314, 15
      %s319 = smul.addr %s318, 2
      %s320 = smul.addr %s316, 32
      %s321 = sadd.s32 %s319, %s320
      %s322 = smul.addr %s321, 8
      %s323 = scalar_lea.vmem %s6, %s322
      %s324 = smul.u32 16, %s22
      %v325 = vld [vmem:[%s304] sm:$0xff]
      %v326 = vld [vmem:[%s304 + $0x8] sm:$0xff]
      %v327 = vld [vmem:[%s304 + $0x10] sm:$0x3]
      %v328 = vld [vmem:[%s304 + $0x18] sm:$0xff]
      %v329 = vld [vmem:[%s304 + $0x20] sm:$0xff]
      %v330 = vld [vmem:[%s304 + $0x28] sm:$0x3]
      %v331 = vld [vmem:[%s304 + $0x30] sm:$0xff]
      %v332 = vld [vmem:[%s304 + $0x38] sm:$0xff]
      %v333 = vld [vmem:[%s304 + $0x40] sm:$0x3]
      %v334 = vld [vmem:[%s304 + $0x48] sm:$0xff]
      %v335 = vld [vmem:[%s304 + $0x50] sm:$0xff]
      %v336 = vld [vmem:[%s304 + $0x58] sm:$0x3]
      %v337 = vld [vmem:[%s304 + $0x60] sm:$0xff]
      %v338 = vld [vmem:[%s304 + $0x68] sm:$0xff]
      %v339 = vld [vmem:[%s304 + $0x70] sm:$0x3]
      %v340 = vld [vmem:[%s304 + $0x78] sm:$0xff]
      %v341 = vld [vmem:[%s304 + $0x80] sm:$0xff]
      %v342 = vld [vmem:[%s304 + $0x88] sm:$0x3]
      %v343 = vld [vmem:[%s304 + $0x90] sm:$0xff]
      %v344 = vld [vmem:[%s304 + $0x98] sm:$0xff]
      %v345 = vld [vmem:[%s304 + $0xa0] sm:$0x3]
      %v346 = vld [vmem:[%s304 + $0xa8] sm:$0xff]
      %v347 = vld [vmem:[%s304 + $0xb0] sm:$0xff]
      %v348 = vld [vmem:[%s304 + $0xb8] sm:$0x3]
      %v349 = vld [vmem:[%s304 + $0xc0] sm:$0xff]
      %v350 = vld [vmem:[%s304 + $0xc8] sm:$0xff]
      %v351 = vld [vmem:[%s304 + $0xd0] sm:$0x3]
      %v352 = vld [vmem:[%s304 + $0xd8] sm:$0xff]
      %v353 = vld [vmem:[%s304 + $0xe0] sm:$0xff]
      %v354 = vld [vmem:[%s304 + $0xe8] sm:$0x3]
      %v355 = vld [vmem:[%s304 + $0xf0] sm:$0xff]
      %v356 = vld [vmem:[%s304 + $0xf8] sm:$0xff]
      %v357 = vld [vmem:[%s304 + $0x100] sm:$0x3]
      %v358 = vld [vmem:[%s304 + $0x108] sm:$0xff]
      %v359 = vld [vmem:[%s304 + $0x110] sm:$0xff]
      %v360 = vld [vmem:[%s304 + $0x118] sm:$0x3]
      %v361 = vld [vmem:[%s304 + $0x120] sm:$0xff]
      %v362 = vld [vmem:[%s304 + $0x128] sm:$0xff]
      %v363 = vld [vmem:[%s304 + $0x130] sm:$0x3]
      %v364 = vld [vmem:[%s304 + $0x138] sm:$0xff]
      %v365 = vld [vmem:[%s304 + $0x140] sm:$0xff]
      %v366 = vld [vmem:[%s304 + $0x148] sm:$0x3]
      %v367 = vld [vmem:[%s304 + $0x150] sm:$0xff]
      %v368 = vld [vmem:[%s304 + $0x158] sm:$0xff]
      %v369 = vld [vmem:[%s304 + $0x160] sm:$0x3]
      %v370 = vld [vmem:[%s304 + $0x168] sm:$0xff]
      %v371 = vld [vmem:[%s304 + $0x170] sm:$0xff]
      %v372 = vld [vmem:[%s304 + $0x178] sm:$0x3]
      %v373 = vld [vmem:[%s313] sm:$0xff]
      %v374 = vld [vmem:[%s313 + $0x8] sm:$0xff]
      %v375 = vld [vmem:[%s313 + $0x10] sm:$0x3]
      %v376 = vld [vmem:[%s313 + $0x18] sm:$0xff]
      %v377 = vld [vmem:[%s313 + $0x20] sm:$0xff]
      %v378 = vld [vmem:[%s313 + $0x28] sm:$0x3]
      %v379 = vld [vmem:[%s2] sm:$0x1]
      %v380 = vlaneseq
      %v381 = vshrl.u32 %v380, 7
      %v382 = vsub.s32 0, %v381
      %v383 = vrot.slane %v379, %v382
      %v384 = vmul.f32 %v325, %v383
      %v385 = vmul.f32 %v326, %v383
      %v386 = vmul.f32 %v328, %v383
      %v387 = vmul.f32 %v329, %v383
      %v388 = vmul.f32 %v331, %v383
      %v389 = vmul.f32 %v332, %v383
      %v390 = vmul.f32 %v334, %v383
      %v391 = vmul.f32 %v335, %v383
      %v392 = vmul.f32 %v337, %v383
      %v393 = vmul.f32 %v338, %v383
      %v394 = vmul.f32 %v340, %v383
      %v395 = vmul.f32 %v341, %v383
      %v396 = vmul.f32 %v343, %v383
      %v397 = vmul.f32 %v344, %v383
      %v398 = vmul.f32 %v346, %v383
      %v399 = vmul.f32 %v347, %v383
      %v400 = vmul.f32 %v349, %v383
      %v401 = vmul.f32 %v350, %v383
      %v402 = vmul.f32 %v352, %v383
      %v403 = vmul.f32 %v353, %v383
      %v404 = vmul.f32 %v355, %v383
      %v405 = vmul.f32 %v356, %v383
      %v406 = vmul.f32 %v358, %v383
      %v407 = vmul.f32 %v359, %v383
      %v408 = vmul.f32 %v361, %v383
      %v409 = vmul.f32 %v362, %v383
      %v410 = vmul.f32 %v364, %v383
      %v411 = vmul.f32 %v365, %v383
      %v412 = vmul.f32 %v367, %v383
      %v413 = vmul.f32 %v368, %v383
      %v414 = vmul.f32 %v370, %v383
      %v415 = vmul.f32 %v371, %v383
      %v416 = vadd.f32 %v384, 0.0
      %v417 = vadd.f32 %v385, 0.0
      %v418 = vadd.f32 %v386, 0.0
      %v419 = vadd.f32 %v387, 0.0
      %v420 = vadd.f32 %v388, 0.0
      %v421 = vadd.f32 %v389, 0.0
      %v422 = vadd.f32 %v390, 0.0
      %v423 = vadd.f32 %v391, 0.0
      %v424 = vadd.f32 %v392, 0.0
      %v425 = vadd.f32 %v393, 0.0
      %v426 = vadd.f32 %v394, 0.0
      %v427 = vadd.f32 %v395, 0.0
      %v428 = vadd.f32 %v396, 0.0
      %v429 = vadd.f32 %v397, 0.0
      %v430 = vadd.f32 %v398, 0.0
      %v431 = vadd.f32 %v399, 0.0
      %v432 = vadd.f32 %v400, 0.0
      %v433 = vadd.f32 %v401, 0.0
      %v434 = vadd.f32 %v402, 0.0
      %v435 = vadd.f32 %v403, 0.0
      %v436 = vadd.f32 %v404, 0.0
      %v437 = vadd.f32 %v405, 0.0
      %v438 = vadd.f32 %v406, 0.0
      %v439 = vadd.f32 %v407, 0.0
      %v440 = vadd.f32 %v408, 0.0
      %v441 = vadd.f32 %v409, 0.0
      %v442 = vadd.f32 %v410, 0.0
      %v443 = vadd.f32 %v411, 0.0
      %v444 = vadd.f32 %v412, 0.0
      %v445 = vadd.f32 %v413, 0.0
      %v446 = vadd.f32 %v414, 0.0
      %v447 = vadd.f32 %v415, 0.0
      %v448 = vld [vmem:[%s2 + $0x3] sm:$0x1]
      %v449 = vlaneseq
      %v450 = vshrl.u32 %v449, 7
      %v451 = vsub.s32 0, %v450
      %v452 = vrot.slane %v448, %v451
      %v453 = vmul.f32 %v328, %v452
      %v454 = vmul.f32 %v329, %v452
      %v455 = vmul.f32 %v331, %v452
      %v456 = vmul.f32 %v332, %v452
      %v457 = vmul.f32 %v334, %v452
      %v458 = vmul.f32 %v335, %v452
      %v459 = vmul.f32 %v337, %v452
      %v460 = vmul.f32 %v338, %v452
      %v461 = vmul.f32 %v340, %v452
      %v462 = vmul.f32 %v341, %v452
      %v463 = vmul.f32 %v343, %v452
      %v464 = vmul.f32 %v344, %v452
      %v465 = vmul.f32 %v346, %v452
      %v466 = vmul.f32 %v347, %v452
      %v467 = vmul.f32 %v349, %v452
      %v468 = vmul.f32 %v350, %v452
      %v469 = vmul.f32 %v352, %v452
      %v470 = vmul.f32 %v353, %v452
      %v471 = vmul.f32 %v355, %v452
      %v472 = vmul.f32 %v356, %v452
      %v473 = vmul.f32 %v358, %v452
      %v474 = vmul.f32 %v359, %v452
      %v475 = vmul.f32 %v361, %v452
      %v476 = vmul.f32 %v362, %v452
      %v477 = vmul.f32 %v364, %v452
      %v478 = vmul.f32 %v365, %v452
      %v479 = vmul.f32 %v367, %v452
      %v480 = vmul.f32 %v368, %v452
      %v481 = vmul.f32 %v370, %v452
      %v482 = vmul.f32 %v371, %v452
      %v483 = vmul.f32 %v373, %v452
      %v484 = vmul.f32 %v374, %v452
      %v485 = vadd.f32 %v416, %v453
      %v486 = vadd.f32 %v417, %v454
      %v487 = vadd.f32 %v418, %v455
      %v488 = vadd.f32 %v419, %v456
      %v489 = vadd.f32 %v420, %v457
      %v490 = vadd.f32 %v421, %v458
      %v491 = vadd.f32 %v422, %v459
      %v492 = vadd.f32 %v423, %v460
      %v493 = vadd.f32 %v424, %v461
      %v494 = vadd.f32 %v425, %v462
      %v495 = vadd.f32 %v426, %v463
      %v496 = vadd.f32 %v427, %v464
      %v497 = vadd.f32 %v428, %v465
      %v498 = vadd.f32 %v429, %v466
      %v499 = vadd.f32 %v430, %v467
      %v500 = vadd.f32 %v431, %v468
      %v501 = vadd.f32 %v432, %v469
      %v502 = vadd.f32 %v433, %v470
      %v503 = vadd.f32 %v434, %v471
      %v504 = vadd.f32 %v435, %v472
      %v505 = vadd.f32 %v436, %v473
      %v506 = vadd.f32 %v437, %v474
      %v507 = vadd.f32 %v438, %v475
      %v508 = vadd.f32 %v439, %v476
      %v509 = vadd.f32 %v440, %v477
      %v510 = vadd.f32 %v441, %v478
      %v511 = vadd.f32 %v442, %v479
      %v512 = vadd.f32 %v443, %v480
      %v513 = vadd.f32 %v444, %v481
      %v514 = vadd.f32 %v445, %v482
      %v515 = vadd.f32 %v446, %v483
      %v516 = vadd.f32 %v447, %v484
      %v517 = vld [vmem:[%s2 + $0x6] sm:$0x1]
      %v518 = vlaneseq
      %v519 = vshrl.u32 %v518, 7
      %v520 = vsub.s32 0, %v519
      %v521 = vrot.slane %v517, %v520
      %v522 = vmul.f32 %v331, %v521
      %v523 = vmul.f32 %v332, %v521
      %v524 = vmul.f32 %v334, %v521
      %v525 = vmul.f32 %v335, %v521
      %v526 = vmul.f32 %v337, %v521
      %v527 = vmul.f32 %v338, %v521
      %v528 = vmul.f32 %v340, %v521
      %v529 = vmul.f32 %v341, %v521
      %v530 = vmul.f32 %v343, %v521
      %v531 = vmul.f32 %v344, %v521
      %v532 = vmul.f32 %v346, %v521
      %v533 = vmul.f32 %v347, %v521
      %v534 = vmul.f32 %v349, %v521
      %v535 = vmul.f32 %v350, %v521
      %v536 = vmul.f32 %v352, %v521
      %v537 = vmul.f32 %v353, %v521
      %v538 = vmul.f32 %v355, %v521
      %v539 = vmul.f32 %v356, %v521
      %v540 = vmul.f32 %v358, %v521
      %v541 = vmul.f32 %v359, %v521
      %v542 = vmul.f32 %v361, %v521
      %v543 = vmul.f32 %v362, %v521
      %v544 = vmul.f32 %v364, %v521
      %v545 = vmul.f32 %v365, %v521
      %v546 = vmul.f32 %v367, %v521
      %v547 = vmul.f32 %v368, %v521
      %v548 = vmul.f32 %v370, %v521
      %v549 = vmul.f32 %v371, %v521
      %v550 = vmul.f32 %v373, %v521
      %v551 = vmul.f32 %v374, %v521
      %v552 = vmul.f32 %v376, %v521
      %v553 = vmul.f32 %v377, %v521
      %v554 = vadd.f32 %v485, %v522
      %v555 = vadd.f32 %v486, %v523
      %v556 = vadd.f32 %v487, %v524
      %v557 = vadd.f32 %v488, %v525
      %v558 = vadd.f32 %v489, %v526
      %v559 = vadd.f32 %v490, %v527
      %v560 = vadd.f32 %v491, %v528
      %v561 = vadd.f32 %v492, %v529
      %v562 = vadd.f32 %v493, %v530
      %v563 = vadd.f32 %v494, %v531
      %v564 = vadd.f32 %v495, %v532
      %v565 = vadd.f32 %v496, %v533
      %v566 = vadd.f32 %v497, %v534
      %v567 = vadd.f32 %v498, %v535
      %v568 = vadd.f32 %v499, %v536
      %v569 = vadd.f32 %v500, %v537
      %v570 = vadd.f32 %v501, %v538
      %v571 = vadd.f32 %v502, %v539
      %v572 = vadd.f32 %v503, %v540
      %v573 = vadd.f32 %v504, %v541
      %v574 = vadd.f32 %v505, %v542
      %v575 = vadd.f32 %v506, %v543
      %v576 = vadd.f32 %v507, %v544
      %v577 = vadd.f32 %v508, %v545
      %v578 = vadd.f32 %v509, %v546
      %v579 = vadd.f32 %v510, %v547
      %v580 = vadd.f32 %v511, %v548
      %v581 = vadd.f32 %v512, %v549
      %v582 = vadd.f32 %v513, %v550
      %v583 = vadd.f32 %v514, %v551
      %v584 = vadd.f32 %v515, %v552
      %v585 = vadd.f32 %v516, %v553
      %v586 = vld [vmem:[%s2 + $0x1] sm:$0x1]
      %v587 = vlaneseq
      %v588 = vshrl.u32 %v587, 7
      %v589 = vsub.s32 0, %v588
      %v590 = vrot.slane %v586, %v589
      %v591 = vmul.f32 %v325, %v590
      %v592 = vmul.f32 %v326, %v590
      %v593 = vmul.f32 %v327, %v590
      %v594 = vmul.f32 %v328, %v590
      %v595 = vmul.f32 %v329, %v590
      %v596 = vmul.f32 %v330, %v590
      %v597 = vmul.f32 %v331, %v590
      %v598 = vmul.f32 %v332, %v590
      %v599 = vmul.f32 %v333, %v590
      %v600 = vmul.f32 %v334, %v590
      %v601 = vmul.f32 %v335, %v590
      %v602 = vmul.f32 %v336, %v590
      %v603 = vmul.f32 %v337, %v590
      %v604 = vmul.f32 %v338, %v590
      %v605 = vmul.f32 %v339, %v590
      %v606 = vmul.f32 %v340, %v590
      %v607 = vmul.f32 %v341, %v590
      %v608 = vmul.f32 %v342, %v590
      %v609 = vmul.f32 %v343, %v590
      %v610 = vmul.f32 %v344, %v590
      %v611 = vmul.f32 %v345, %v590
      %v612 = vmul.f32 %v346, %v590
      %v613 = vmul.f32 %v347, %v590
      %v614 = vmul.f32 %v348, %v590
      %v615 = vmul.f32 %v349, %v590
      %v616 = vmul.f32 %v350, %v590
      %v617 = vmul.f32 %v351, %v590
      %v618 = vmul.f32 %v352, %v590
      %v619 = vmul.f32 %v353, %v590
      %v620 = vmul.f32 %v354, %v590
      %v621 = vmul.f32 %v355, %v590
      %v622 = vmul.f32 %v356, %v590
      %v623 = vmul.f32 %v357, %v590
      %v624 = vmul.f32 %v358, %v590
      %v625 = vmul.f32 %v359, %v590
      %v626 = vmul.f32 %v360, %v590
      %v627 = vmul.f32 %v361, %v590
      %v628 = vmul.f32 %v362, %v590
      %v629 = vmul.f32 %v363, %v590
      %v630 = vmul.f32 %v364, %v590
      %v631 = vmul.f32 %v365, %v590
      %v632 = vmul.f32 %v366, %v590
      %v633 = vmul.f32 %v367, %v590
      %v634 = vmul.f32 %v368, %v590
      %v635 = vmul.f32 %v369, %v590
      %v636 = vmul.f32 %v370, %v590
      %v637 = vmul.f32 %v371, %v590
      %v638 = vmul.f32 %v372, %v590
      %vm687 = vcmask 1046528
      %v688 = vrot.slane %v591, 1
      %v689 = vrot.slane %v592, 1
      %v690 = vsel %vm687, %v688, %v689
      %v691 = vrot.slane %v593, 1
      %v692 = vsel %vm687, %v689, %v691
      %v693 = vrot.slane %v594, 1
      %v694 = vrot.slane %v595, 1
      %v695 = vsel %vm687, %v693, %v694
      %v696 = vrot.slane %v596, 1
      %v697 = vsel %vm687, %v694, %v696
      %v698 = vrot.slane %v597, 1
      %v699 = vrot.slane %v598, 1
      %v700 = vsel %vm687, %v698, %v699
      %v701 = vrot.slane %v599, 1
      %v702 = vsel %vm687, %v699, %v701
      %v703 = vrot.slane %v600, 1
      %v704 = vrot.slane %v601, 1
      %v705 = vsel %vm687, %v703, %v704
      %v706 = vrot.slane %v602, 1
      %v707 = vsel %vm687, %v704, %v706
      %v708 = vrot.slane %v603, 1
      %v709 = vrot.slane %v604, 1
      %v710 = vsel %vm687, %v708, %v709
      %v711 = vrot.slane %v605, 1
      %v712 = vsel %vm687, %v709, %v711
      %v713 = vrot.slane %v606, 1
      %v714 = vrot.slane %v607, 1
      %v715 = vsel %vm687, %v713, %v714
      %v716 = vrot.slane %v608, 1
      %v717 = vsel %vm687, %v714, %v716
      %v718 = vrot.slane %v609, 1
      %v719 = vrot.slane %v610, 1
      %v720 = vsel %vm687, %v718, %v719
      %v721 = vrot.slane %v611, 1
      %v722 = vsel %vm687, %v719, %v721
      %v723 = vrot.slane %v612, 1
      %v724 = vrot.slane %v613, 1
      %v725 = vsel %vm687, %v723, %v724
      %v726 = vrot.slane %v614, 1
      %v727 = vsel %vm687, %v724, %v726
      %v728 = vrot.slane %v615, 1
      %v729 = vrot.slane %v616, 1
      %v730 = vsel %vm687, %v728, %v729
      %v731 = vrot.slane %v617, 1
      %v732 = vsel %vm687, %v729, %v731
      %v733 = vrot.slane %v618, 1
      %v734 = vrot.slane %v619, 1
      %v735 = vsel %vm687, %v733, %v734
      %v736 = vrot.slane %v620, 1
      %v737 = vsel %vm687, %v734, %v736
      %v738 = vrot.slane %v621, 1
      %v739 = vrot.slane %v622, 1
      %v740 = vsel %vm687, %v738, %v739
      %v741 = vrot.slane %v623, 1
      %v742 = vsel %vm687, %v739, %v741
      %v743 = vrot.slane %v624, 1
      %v744 = vrot.slane %v625, 1
      %v745 = vsel %vm687, %v743, %v744
      %v746 = vrot.slane %v626, 1
      %v747 = vsel %vm687, %v744, %v746
      %v748 = vrot.slane %v627, 1
      %v749 = vrot.slane %v628, 1
      %v750 = vsel %vm687, %v748, %v749
      %v751 = vrot.slane %v629, 1
      %v752 = vsel %vm687, %v749, %v751
      %v753 = vrot.slane %v630, 1
      %v754 = vrot.slane %v631, 1
      %v755 = vsel %vm687, %v753, %v754
      %v756 = vrot.slane %v632, 1
      %v757 = vsel %vm687, %v754, %v756
      %v758 = vrot.slane %v633, 1
      %v759 = vrot.slane %v634, 1
      %v760 = vsel %vm687, %v758, %v759
      %v761 = vrot.slane %v635, 1
      %v762 = vsel %vm687, %v759, %v761
      %v763 = vrot.slane %v636, 1
      %v764 = vrot.slane %v637, 1
      %v765 = vsel %vm687, %v763, %v764
      %v766 = vrot.slane %v638, 1
      %v767 = vsel %vm687, %v764, %v766
      %v800 = vadd.f32 %v554, %v690
      %v801 = vadd.f32 %v555, %v692
      %v802 = vadd.f32 %v556, %v695
      %v803 = vadd.f32 %v557, %v697
      %v804 = vadd.f32 %v558, %v700
      %v805 = vadd.f32 %v559, %v702
      %v806 = vadd.f32 %v560, %v705
      %v807 = vadd.f32 %v561, %v707
      %v808 = vadd.f32 %v562, %v710
      %v809 = vadd.f32 %v563, %v712
      %v810 = vadd.f32 %v564, %v715
      %v811 = vadd.f32 %v565, %v717
      %v812 = vadd.f32 %v566, %v720
      %v813 = vadd.f32 %v567, %v722
      %v814 = vadd.f32 %v568, %v725
      %v815 = vadd.f32 %v569, %v727
      %v816 = vadd.f32 %v570, %v730
      %v817 = vadd.f32 %v571, %v732
      %v818 = vadd.f32 %v572, %v735
      %v819 = vadd.f32 %v573, %v737
      %v820 = vadd.f32 %v574, %v740
      %v821 = vadd.f32 %v575, %v742
      %v822 = vadd.f32 %v576, %v745
      %v823 = vadd.f32 %v577, %v747
      %v824 = vadd.f32 %v578, %v750
      %v825 = vadd.f32 %v579, %v752
      %v826 = vadd.f32 %v580, %v755
      %v827 = vadd.f32 %v581, %v757
      %v828 = vadd.f32 %v582, %v760
      %v829 = vadd.f32 %v583, %v762
      %v830 = vadd.f32 %v584, %v765
      %v831 = vadd.f32 %v585, %v767
      %v832 = vld [vmem:[%s2 + $0x4] sm:$0x1]
      %v833 = vlaneseq
      %v834 = vshrl.u32 %v833, 7
      %v835 = vsub.s32 0, %v834
      %v836 = vrot.slane %v832, %v835
      %v837 = vmul.f32 %v328, %v836
      %v838 = vmul.f32 %v329, %v836
      %v839 = vmul.f32 %v330, %v836
      %v840 = vmul.f32 %v331, %v836
      %v841 = vmul.f32 %v332, %v836
      %v842 = vmul.f32 %v333, %v836
      %v843 = vmul.f32 %v334, %v836
      %v844 = vmul.f32 %v335, %v836
      %v845 = vmul.f32 %v336, %v836
      %v846 = vmul.f32 %v337, %v836
      %v847 = vmul.f32 %v338, %v836
      %v848 = vmul.f32 %v339, %v836
      %v849 = vmul.f32 %v340, %v836
      %v850 = vmul.f32 %v341, %v836
      %v851 = vmul.f32 %v342, %v836
      %v852 = vmul.f32 %v343, %v836
      %v853 = vmul.f32 %v344, %v836
      %v854 = vmul.f32 %v345, %v836
      %v855 = vmul.f32 %v346, %v836
      %v856 = vmul.f32 %v347, %v836
      %v857 = vmul.f32 %v348, %v836
      %v858 = vmul.f32 %v349, %v836
      %v859 = vmul.f32 %v350, %v836
      %v860 = vmul.f32 %v351, %v836
      %v861 = vmul.f32 %v352, %v836
      %v862 = vmul.f32 %v353, %v836
      %v863 = vmul.f32 %v354, %v836
      %v864 = vmul.f32 %v355, %v836
      %v865 = vmul.f32 %v356, %v836
      %v866 = vmul.f32 %v357, %v836
      %v867 = vmul.f32 %v358, %v836
      %v868 = vmul.f32 %v359, %v836
      %v869 = vmul.f32 %v360, %v836
      %v870 = vmul.f32 %v361, %v836
      %v871 = vmul.f32 %v362, %v836
      %v872 = vmul.f32 %v363, %v836
      %v873 = vmul.f32 %v364, %v836
      %v874 = vmul.f32 %v365, %v836
      %v875 = vmul.f32 %v366, %v836
      %v876 = vmul.f32 %v367, %v836
      %v877 = vmul.f32 %v368, %v836
      %v878 = vmul.f32 %v369, %v836
      %v879 = vmul.f32 %v370, %v836
      %v880 = vmul.f32 %v371, %v836
      %v881 = vmul.f32 %v372, %v836
      %v882 = vmul.f32 %v373, %v836
      %v883 = vmul.f32 %v374, %v836
      %v884 = vmul.f32 %v375, %v836
      %v933 = vrot.slane %v837, 1
      %v934 = vrot.slane %v838, 1
      %v935 = vsel %vm687, %v933, %v934
      %v936 = vrot.slane %v839, 1
      %v937 = vsel %vm687, %v934, %v936
      %v938 = vrot.slane %v840, 1
      %v939 = vrot.slane %v841, 1
      %v940 = vsel %vm687, %v938, %v939
      %v941 = vrot.slane %v842, 1
      %v942 = vsel %vm687, %v939, %v941
      %v943 = vrot.slane %v843, 1
      %v944 = vrot.slane %v844, 1
      %v945 = vsel %vm687, %v943, %v944
      %v946 = vrot.slane %v845, 1
      %v947 = vsel %vm687, %v944, %v946
      %v948 = vrot.slane %v846, 1
      %v949 = vrot.slane %v847, 1
      %v950 = vsel %vm687, %v948, %v949
      %v951 = vrot.slane %v848, 1
      %v952 = vsel %vm687, %v949, %v951
      %v953 = vrot.slane %v849, 1
      %v954 = vrot.slane %v850, 1
      %v955 = vsel %vm687, %v953, %v954
      %v956 = vrot.slane %v851, 1
      %v957 = vsel %vm687, %v954, %v956
      %v958 = vrot.slane %v852, 1
      %v959 = vrot.slane %v853, 1
      %v960 = vsel %vm687, %v958, %v959
      %v961 = vrot.slane %v854, 1
      %v962 = vsel %vm687, %v959, %v961
      %v963 = vrot.slane %v855, 1
      %v964 = vrot.slane %v856, 1
      %v965 = vsel %vm687, %v963, %v964
      %v966 = vrot.slane %v857, 1
      %v967 = vsel %vm687, %v964, %v966
      %v968 = vrot.slane %v858, 1
      %v969 = vrot.slane %v859, 1
      %v970 = vsel %vm687, %v968, %v969
      %v971 = vrot.slane %v860, 1
      %v972 = vsel %vm687, %v969, %v971
      %v973 = vrot.slane %v861, 1
      %v974 = vrot.slane %v862, 1
      %v975 = vsel %vm687, %v973, %v974
      %v976 = vrot.slane %v863, 1
      %v977 = vsel %vm687, %v974, %v976
      %v978 = vrot.slane %v864, 1
      %v979 = vrot.slane %v865, 1
      %v980 = vsel %vm687, %v978, %v979
      %v981 = vrot.slane %v866, 1
      %v982 = vsel %vm687, %v979, %v981
      %v983 = vrot.slane %v867, 1
      %v984 = vrot.slane %v868, 1
      %v985 = vsel %vm687, %v983, %v984
      %v986 = vrot.slane %v869, 1
      %v987 = vsel %vm687, %v984, %v986
      %v988 = vrot.slane %v870, 1
      %v989 = vrot.slane %v871, 1
      %v990 = vsel %vm687, %v988, %v989
      %v991 = vrot.slane %v872, 1
      %v992 = vsel %vm687, %v989, %v991
      %v993 = vrot.slane %v873, 1
      %v994 = vrot.slane %v874, 1
      %v995 = vsel %vm687, %v993, %v994
      %v996 = vrot.slane %v875, 1
      %v997 = vsel %vm687, %v994, %v996
      %v998 = vrot.slane %v876, 1
      %v999 = vrot.slane %v877, 1
      %v1000 = vsel %vm687, %v998, %v999
      %v1001 = vrot.slane %v878, 1
      %v1002 = vsel %vm687, %v999, %v1001
      %v1003 = vrot.slane %v879, 1
      %v1004 = vrot.slane %v880, 1
      %v1005 = vsel %vm687, %v1003, %v1004
      %v1006 = vrot.slane %v881, 1
      %v1007 = vsel %vm687, %v1004, %v1006
      %v1008 = vrot.slane %v882, 1
      %v1009 = vrot.slane %v883, 1
      %v1010 = vsel %vm687, %v1008, %v1009
      %v1011 = vrot.slane %v884, 1
      %v1012 = vsel %vm687, %v1009, %v1011
      %v1045 = vadd.f32 %v800, %v935
      %v1046 = vadd.f32 %v801, %v937
      %v1047 = vadd.f32 %v802, %v940
      %v1048 = vadd.f32 %v803, %v942
      %v1049 = vadd.f32 %v804, %v945
      %v1050 = vadd.f32 %v805, %v947
      %v1051 = vadd.f32 %v806, %v950
      %v1052 = vadd.f32 %v807, %v952
      %v1053 = vadd.f32 %v808, %v955
      %v1054 = vadd.f32 %v809, %v957
      %v1055 = vadd.f32 %v810, %v960
      %v1056 = vadd.f32 %v811, %v962
      %v1057 = vadd.f32 %v812, %v965
      %v1058 = vadd.f32 %v813, %v967
      %v1059 = vadd.f32 %v814, %v970
      %v1060 = vadd.f32 %v815, %v972
      %v1061 = vadd.f32 %v816, %v975
      %v1062 = vadd.f32 %v817, %v977
      %v1063 = vadd.f32 %v818, %v980
      %v1064 = vadd.f32 %v819, %v982
      %v1065 = vadd.f32 %v820, %v985
      %v1066 = vadd.f32 %v821, %v987
      %v1067 = vadd.f32 %v822, %v990
      %v1068 = vadd.f32 %v823, %v992
      %v1069 = vadd.f32 %v824, %v995
      %v1070 = vadd.f32 %v825, %v997
      %v1071 = vadd.f32 %v826, %v1000
      %v1072 = vadd.f32 %v827, %v1002
      %v1073 = vadd.f32 %v828, %v1005
      %v1074 = vadd.f32 %v829, %v1007
      %v1075 = vadd.f32 %v830, %v1010
      %v1076 = vadd.f32 %v831, %v1012
      %v1077 = vld [vmem:[%s2 + $0x7] sm:$0x1]
      %v1078 = vlaneseq
      %v1079 = vshrl.u32 %v1078, 7
      %v1080 = vsub.s32 0, %v1079
      %v1081 = vrot.slane %v1077, %v1080
      %v1082 = vmul.f32 %v331, %v1081
      %v1083 = vmul.f32 %v332, %v1081
      %v1084 = vmul.f32 %v333, %v1081
      %v1085 = vmul.f32 %v334, %v1081
      %v1086 = vmul.f32 %v335, %v1081
      %v1087 = vmul.f32 %v336, %v1081
      %v1088 = vmul.f32 %v337, %v1081
      %v1089 = vmul.f32 %v338, %v1081
      %v1090 = vmul.f32 %v339, %v1081
      %v1091 = vmul.f32 %v340, %v1081
      %v1092 = vmul.f32 %v341, %v1081
      %v1093 = vmul.f32 %v342, %v1081
      %v1094 = vmul.f32 %v343, %v1081
      %v1095 = vmul.f32 %v344, %v1081
      %v1096 = vmul.f32 %v345, %v1081
      %v1097 = vmul.f32 %v346, %v1081
      %v1098 = vmul.f32 %v347, %v1081
      %v1099 = vmul.f32 %v348, %v1081
      %v1100 = vmul.f32 %v349, %v1081
      %v1101 = vmul.f32 %v350, %v1081
      %v1102 = vmul.f32 %v351, %v1081
      %v1103 = vmul.f32 %v352, %v1081
      %v1104 = vmul.f32 %v353, %v1081
      %v1105 = vmul.f32 %v354, %v1081
      %v1106 = vmul.f32 %v355, %v1081
      %v1107 = vmul.f32 %v356, %v1081
      %v1108 = vmul.f32 %v357, %v1081
      %v1109 = vmul.f32 %v358, %v1081
      %v1110 = vmul.f32 %v359, %v1081
      %v1111 = vmul.f32 %v360, %v1081
      %v1112 = vmul.f32 %v361, %v1081
      %v1113 = vmul.f32 %v362, %v1081
      %v1114 = vmul.f32 %v363, %v1081
      %v1115 = vmul.f32 %v364, %v1081
      %v1116 = vmul.f32 %v365, %v1081
      %v1117 = vmul.f32 %v366, %v1081
      %v1118 = vmul.f32 %v367, %v1081
      %v1119 = vmul.f32 %v368, %v1081
      %v1120 = vmul.f32 %v369, %v1081
      %v1121 = vmul.f32 %v370, %v1081
      %v1122 = vmul.f32 %v371, %v1081
      %v1123 = vmul.f32 %v372, %v1081
      %v1124 = vmul.f32 %v373, %v1081
      %v1125 = vmul.f32 %v374, %v1081
      %v1126 = vmul.f32 %v375, %v1081
      %v1127 = vmul.f32 %v376, %v1081
      %v1128 = vmul.f32 %v377, %v1081
      %v1129 = vmul.f32 %v378, %v1081
      %v1178 = vrot.slane %v1082, 1
      %v1179 = vrot.slane %v1083, 1
      %v1180 = vsel %vm687, %v1178, %v1179
      %v1181 = vrot.slane %v1084, 1
      %v1182 = vsel %vm687, %v1179, %v1181
      %v1183 = vrot.slane %v1085, 1
      %v1184 = vrot.slane %v1086, 1
      %v1185 = vsel %vm687, %v1183, %v1184
      %v1186 = vrot.slane %v1087, 1
      %v1187 = vsel %vm687, %v1184, %v1186
      %v1188 = vrot.slane %v1088, 1
      %v1189 = vrot.slane %v1089, 1
      %v1190 = vsel %vm687, %v1188, %v1189
      %v1191 = vrot.slane %v1090, 1
      %v1192 = vsel %vm687, %v1189, %v1191
      %v1193 = vrot.slane %v1091, 1
      %v1194 = vrot.slane %v1092, 1
      %v1195 = vsel %vm687, %v1193, %v1194
      %v1196 = vrot.slane %v1093, 1
      %v1197 = vsel %vm687, %v1194, %v1196
      %v1198 = vrot.slane %v1094, 1
      %v1199 = vrot.slane %v1095, 1
      %v1200 = vsel %vm687, %v1198, %v1199
      %v1201 = vrot.slane %v1096, 1
      %v1202 = vsel %vm687, %v1199, %v1201
      %v1203 = vrot.slane %v1097, 1
      %v1204 = vrot.slane %v1098, 1
      %v1205 = vsel %vm687, %v1203, %v1204
      %v1206 = vrot.slane %v1099, 1
      %v1207 = vsel %vm687, %v1204, %v1206
      %v1208 = vrot.slane %v1100, 1
      %v1209 = vrot.slane %v1101, 1
      %v1210 = vsel %vm687, %v1208, %v1209
      %v1211 = vrot.slane %v1102, 1
      %v1212 = vsel %vm687, %v1209, %v1211
      %v1213 = vrot.slane %v1103, 1
      %v1214 = vrot.slane %v1104, 1
      %v1215 = vsel %vm687, %v1213, %v1214
      %v1216 = vrot.slane %v1105, 1
      %v1217 = vsel %vm687, %v1214, %v1216
      %v1218 = vrot.slane %v1106, 1
      %v1219 = vrot.slane %v1107, 1
      %v1220 = vsel %vm687, %v1218, %v1219
      %v1221 = vrot.slane %v1108, 1
      %v1222 = vsel %vm687, %v1219, %v1221
      %v1223 = vrot.slane %v1109, 1
      %v1224 = vrot.slane %v1110, 1
      %v1225 = vsel %vm687, %v1223, %v1224
      %v1226 = vrot.slane %v1111, 1
      %v1227 = vsel %vm687, %v1224, %v1226
      %v1228 = vrot.slane %v1112, 1
      %v1229 = vrot.slane %v1113, 1
      %v1230 = vsel %vm687, %v1228, %v1229
      %v1231 = vrot.slane %v1114, 1
      %v1232 = vsel %vm687, %v1229, %v1231
      %v1233 = vrot.slane %v1115, 1
      %v1234 = vrot.slane %v1116, 1
      %v1235 = vsel %vm687, %v1233, %v1234
      %v1236 = vrot.slane %v1117, 1
      %v1237 = vsel %vm687, %v1234, %v1236
      %v1238 = vrot.slane %v1118, 1
      %v1239 = vrot.slane %v1119, 1
      %v1240 = vsel %vm687, %v1238, %v1239
      %v1241 = vrot.slane %v1120, 1
      %v1242 = vsel %vm687, %v1239, %v1241
      %v1243 = vrot.slane %v1121, 1
      %v1244 = vrot.slane %v1122, 1
      %v1245 = vsel %vm687, %v1243, %v1244
      %v1246 = vrot.slane %v1123, 1
      %v1247 = vsel %vm687, %v1244, %v1246
      %v1248 = vrot.slane %v1124, 1
      %v1249 = vrot.slane %v1125, 1
      %v1250 = vsel %vm687, %v1248, %v1249
      %v1251 = vrot.slane %v1126, 1
      %v1252 = vsel %vm687, %v1249, %v1251
      %v1253 = vrot.slane %v1127, 1
      %v1254 = vrot.slane %v1128, 1
      %v1255 = vsel %vm687, %v1253, %v1254
      %v1256 = vrot.slane %v1129, 1
      %v1257 = vsel %vm687, %v1254, %v1256
      %v1290 = vadd.f32 %v1045, %v1180
      %v1291 = vadd.f32 %v1046, %v1182
      %v1292 = vadd.f32 %v1047, %v1185
      %v1293 = vadd.f32 %v1048, %v1187
      %v1294 = vadd.f32 %v1049, %v1190
      %v1295 = vadd.f32 %v1050, %v1192
      %v1296 = vadd.f32 %v1051, %v1195
      %v1297 = vadd.f32 %v1052, %v1197
      %v1298 = vadd.f32 %v1053, %v1200
      %v1299 = vadd.f32 %v1054, %v1202
      %v1300 = vadd.f32 %v1055, %v1205
      %v1301 = vadd.f32 %v1056, %v1207
      %v1302 = vadd.f32 %v1057, %v1210
      %v1303 = vadd.f32 %v1058, %v1212
      %v1304 = vadd.f32 %v1059, %v1215
      %v1305 = vadd.f32 %v1060, %v1217
      %v1306 = vadd.f32 %v1061, %v1220
      %v1307 = vadd.f32 %v1062, %v1222
      %v1308 = vadd.f32 %v1063, %v1225
      %v1309 = vadd.f32 %v1064, %v1227
      %v1310 = vadd.f32 %v1065, %v1230
      %v1311 = vadd.f32 %v1066, %v1232
      %v1312 = vadd.f32 %v1067, %v1235
      %v1313 = vadd.f32 %v1068, %v1237
      %v1314 = vadd.f32 %v1069, %v1240
      %v1315 = vadd.f32 %v1070, %v1242
      %v1316 = vadd.f32 %v1071, %v1245
      %v1317 = vadd.f32 %v1072, %v1247
      %v1318 = vadd.f32 %v1073, %v1250
      %v1319 = vadd.f32 %v1074, %v1252
      %v1320 = vadd.f32 %v1075, %v1255
      %v1321 = vadd.f32 %v1076, %v1257
      %v1322 = vld [vmem:[%s2 + $0x2] sm:$0x1]
      %v1323 = vlaneseq
      %v1324 = vshrl.u32 %v1323, 7
      %v1325 = vsub.s32 0, %v1324
      %v1326 = vrot.slane %v1322, %v1325
      %v1327 = vmul.f32 %v325, %v1326
      %v1328 = vmul.f32 %v326, %v1326
      %v1329 = vmul.f32 %v327, %v1326
      %v1330 = vmul.f32 %v328, %v1326
      %v1331 = vmul.f32 %v329, %v1326
      %v1332 = vmul.f32 %v330, %v1326
      %v1333 = vmul.f32 %v331, %v1326
      %v1334 = vmul.f32 %v332, %v1326
      %v1335 = vmul.f32 %v333, %v1326
      %v1336 = vmul.f32 %v334, %v1326
      %v1337 = vmul.f32 %v335, %v1326
      %v1338 = vmul.f32 %v336, %v1326
      %v1339 = vmul.f32 %v337, %v1326
      %v1340 = vmul.f32 %v338, %v1326
      %v1341 = vmul.f32 %v339, %v1326
      %v1342 = vmul.f32 %v340, %v1326
      %v1343 = vmul.f32 %v341, %v1326
      %v1344 = vmul.f32 %v342, %v1326
      %v1345 = vmul.f32 %v343, %v1326
      %v1346 = vmul.f32 %v344, %v1326
      %v1347 = vmul.f32 %v345, %v1326
      %v1348 = vmul.f32 %v346, %v1326
      %v1349 = vmul.f32 %v347, %v1326
      %v1350 = vmul.f32 %v348, %v1326
      %v1351 = vmul.f32 %v349, %v1326
      %v1352 = vmul.f32 %v350, %v1326
      %v1353 = vmul.f32 %v351, %v1326
      %v1354 = vmul.f32 %v352, %v1326
      %v1355 = vmul.f32 %v353, %v1326
      %v1356 = vmul.f32 %v354, %v1326
      %v1357 = vmul.f32 %v355, %v1326
      %v1358 = vmul.f32 %v356, %v1326
      %v1359 = vmul.f32 %v357, %v1326
      %v1360 = vmul.f32 %v358, %v1326
      %v1361 = vmul.f32 %v359, %v1326
      %v1362 = vmul.f32 %v360, %v1326
      %v1363 = vmul.f32 %v361, %v1326
      %v1364 = vmul.f32 %v362, %v1326
      %v1365 = vmul.f32 %v363, %v1326
      %v1366 = vmul.f32 %v364, %v1326
      %v1367 = vmul.f32 %v365, %v1326
      %v1368 = vmul.f32 %v366, %v1326
      %v1369 = vmul.f32 %v367, %v1326
      %v1370 = vmul.f32 %v368, %v1326
      %v1371 = vmul.f32 %v369, %v1326
      %v1372 = vmul.f32 %v370, %v1326
      %v1373 = vmul.f32 %v371, %v1326
      %v1374 = vmul.f32 %v372, %v1326
      %vm1423 = vcmask 1045504
      %v1424 = vrot.slane %v1327, 2
      %v1425 = vrot.slane %v1328, 2
      %v1426 = vsel %vm1423, %v1424, %v1425
      %v1427 = vrot.slane %v1329, 2
      %v1428 = vsel %vm1423, %v1425, %v1427
      %v1429 = vrot.slane %v1330, 2
      %v1430 = vrot.slane %v1331, 2
      %v1431 = vsel %vm1423, %v1429, %v1430
      %v1432 = vrot.slane %v1332, 2
      %v1433 = vsel %vm1423, %v1430, %v1432
      %v1434 = vrot.slane %v1333, 2
      %v1435 = vrot.slane %v1334, 2
      %v1436 = vsel %vm1423, %v1434, %v1435
      %v1437 = vrot.slane %v1335, 2
      %v1438 = vsel %vm1423, %v1435, %v1437
      %v1439 = vrot.slane %v1336, 2
      %v1440 = vrot.slane %v1337, 2
      %v1441 = vsel %vm1423, %v1439, %v1440
      %v1442 = vrot.slane %v1338, 2
      %v1443 = vsel %vm1423, %v1440, %v1442
      %v1444 = vrot.slane %v1339, 2
      %v1445 = vrot.slane %v1340, 2
      %v1446 = vsel %vm1423, %v1444, %v1445
      %v1447 = vrot.slane %v1341, 2
      %v1448 = vsel %vm1423, %v1445, %v1447
      %v1449 = vrot.slane %v1342, 2
      %v1450 = vrot.slane %v1343, 2
      %v1451 = vsel %vm1423, %v1449, %v1450
      %v1452 = vrot.slane %v1344, 2
      %v1453 = vsel %vm1423, %v1450, %v1452
      %v1454 = vrot.slane %v1345, 2
      %v1455 = vrot.slane %v1346, 2
      %v1456 = vsel %vm1423, %v1454, %v1455
      %v1457 = vrot.slane %v1347, 2
      %v1458 = vsel %vm1423, %v1455, %v1457
      %v1459 = vrot.slane %v1348, 2
      %v1460 = vrot.slane %v1349, 2
      %v1461 = vsel %vm1423, %v1459, %v1460
      %v1462 = vrot.slane %v1350, 2
      %v1463 = vsel %vm1423, %v1460, %v1462
      %v1464 = vrot.slane %v1351, 2
      %v1465 = vrot.slane %v1352, 2
      %v1466 = vsel %vm1423, %v1464, %v1465
      %v1467 = vrot.slane %v1353, 2
      %v1468 = vsel %vm1423, %v1465, %v1467
      %v1469 = vrot.slane %v1354, 2
      %v1470 = vrot.slane %v1355, 2
      %v1471 = vsel %vm1423, %v1469, %v1470
      %v1472 = vrot.slane %v1356, 2
      %v1473 = vsel %vm1423, %v1470, %v1472
      %v1474 = vrot.slane %v1357, 2
      %v1475 = vrot.slane %v1358, 2
      %v1476 = vsel %vm1423, %v1474, %v1475
      %v1477 = vrot.slane %v1359, 2
      %v1478 = vsel %vm1423, %v1475, %v1477
      %v1479 = vrot.slane %v1360, 2
      %v1480 = vrot.slane %v1361, 2
      %v1481 = vsel %vm1423, %v1479, %v1480
      %v1482 = vrot.slane %v1362, 2
      %v1483 = vsel %vm1423, %v1480, %v1482
      %v1484 = vrot.slane %v1363, 2
      %v1485 = vrot.slane %v1364, 2
      %v1486 = vsel %vm1423, %v1484, %v1485
      %v1487 = vrot.slane %v1365, 2
      %v1488 = vsel %vm1423, %v1485, %v1487
      %v1489 = vrot.slane %v1366, 2
      %v1490 = vrot.slane %v1367, 2
      %v1491 = vsel %vm1423, %v1489, %v1490
      %v1492 = vrot.slane %v1368, 2
      %v1493 = vsel %vm1423, %v1490, %v1492
      %v1494 = vrot.slane %v1369, 2
      %v1495 = vrot.slane %v1370, 2
      %v1496 = vsel %vm1423, %v1494, %v1495
      %v1497 = vrot.slane %v1371, 2
      %v1498 = vsel %vm1423, %v1495, %v1497
      %v1499 = vrot.slane %v1372, 2
      %v1500 = vrot.slane %v1373, 2
      %v1501 = vsel %vm1423, %v1499, %v1500
      %v1502 = vrot.slane %v1374, 2
      %v1503 = vsel %vm1423, %v1500, %v1502
      %v1536 = vadd.f32 %v1290, %v1426
      %v1537 = vadd.f32 %v1291, %v1428
      %v1538 = vadd.f32 %v1292, %v1431
      %v1539 = vadd.f32 %v1293, %v1433
      %v1540 = vadd.f32 %v1294, %v1436
      %v1541 = vadd.f32 %v1295, %v1438
      %v1542 = vadd.f32 %v1296, %v1441
      %v1543 = vadd.f32 %v1297, %v1443
      %v1544 = vadd.f32 %v1298, %v1446
      %v1545 = vadd.f32 %v1299, %v1448
      %v1546 = vadd.f32 %v1300, %v1451
      %v1547 = vadd.f32 %v1301, %v1453
      %v1548 = vadd.f32 %v1302, %v1456
      %v1549 = vadd.f32 %v1303, %v1458
      %v1550 = vadd.f32 %v1304, %v1461
      %v1551 = vadd.f32 %v1305, %v1463
      %v1552 = vadd.f32 %v1306, %v1466
      %v1553 = vadd.f32 %v1307, %v1468
      %v1554 = vadd.f32 %v1308, %v1471
      %v1555 = vadd.f32 %v1309, %v1473
      %v1556 = vadd.f32 %v1310, %v1476
      %v1557 = vadd.f32 %v1311, %v1478
      %v1558 = vadd.f32 %v1312, %v1481
      %v1559 = vadd.f32 %v1313, %v1483
      %v1560 = vadd.f32 %v1314, %v1486
      %v1561 = vadd.f32 %v1315, %v1488
      %v1562 = vadd.f32 %v1316, %v1491
      %v1563 = vadd.f32 %v1317, %v1493
      %v1564 = vadd.f32 %v1318, %v1496
      %v1565 = vadd.f32 %v1319, %v1498
      %v1566 = vadd.f32 %v1320, %v1501
      %v1567 = vadd.f32 %v1321, %v1503
      %v1568 = vld [vmem:[%s2 + $0x5] sm:$0x1]
      %v1569 = vlaneseq
      %v1570 = vshrl.u32 %v1569, 7
      %v1571 = vsub.s32 0, %v1570
      %v1572 = vrot.slane %v1568, %v1571
      %v1573 = vmul.f32 %v328, %v1572
      %v1574 = vmul.f32 %v329, %v1572
      %v1575 = vmul.f32 %v330, %v1572
      %v1576 = vmul.f32 %v331, %v1572
      %v1577 = vmul.f32 %v332, %v1572
      %v1578 = vmul.f32 %v333, %v1572
      %v1579 = vmul.f32 %v334, %v1572
      %v1580 = vmul.f32 %v335, %v1572
      %v1581 = vmul.f32 %v336, %v1572
      %v1582 = vmul.f32 %v337, %v1572
      %v1583 = vmul.f32 %v338, %v1572
      %v1584 = vmul.f32 %v339, %v1572
      %v1585 = vmul.f32 %v340, %v1572
      %v1586 = vmul.f32 %v341, %v1572
      %v1587 = vmul.f32 %v342, %v1572
      %v1588 = vmul.f32 %v343, %v1572
      %v1589 = vmul.f32 %v344, %v1572
      %v1590 = vmul.f32 %v345, %v1572
      %v1591 = vmul.f32 %v346, %v1572
      %v1592 = vmul.f32 %v347, %v1572
      %v1593 = vmul.f32 %v348, %v1572
      %v1594 = vmul.f32 %v349, %v1572
      %v1595 = vmul.f32 %v350, %v1572
      %v1596 = vmul.f32 %v351, %v1572
      %v1597 = vmul.f32 %v352, %v1572
      %v1598 = vmul.f32 %v353, %v1572
      %v1599 = vmul.f32 %v354, %v1572
      %v1600 = vmul.f32 %v355, %v1572
      %v1601 = vmul.f32 %v356, %v1572
      %v1602 = vmul.f32 %v357, %v1572
      %v1603 = vmul.f32 %v358, %v1572
      %v1604 = vmul.f32 %v359, %v1572
      %v1605 = vmul.f32 %v360, %v1572
      %v1606 = vmul.f32 %v361, %v1572
      %v1607 = vmul.f32 %v362, %v1572
      %v1608 = vmul.f32 %v363, %v1572
      %v1609 = vmul.f32 %v364, %v1572
      %v1610 = vmul.f32 %v365, %v1572
      %v1611 = vmul.f32 %v366, %v1572
      %v1612 = vmul.f32 %v367, %v1572
      %v1613 = vmul.f32 %v368, %v1572
      %v1614 = vmul.f32 %v369, %v1572
      %v1615 = vmul.f32 %v370, %v1572
      %v1616 = vmul.f32 %v371, %v1572
      %v1617 = vmul.f32 %v372, %v1572
      %v1618 = vmul.f32 %v373, %v1572
      %v1619 = vmul.f32 %v374, %v1572
      %v1620 = vmul.f32 %v375, %v1572
      %v1669 = vrot.slane %v1573, 2
      %v1670 = vrot.slane %v1574, 2
      %v1671 = vsel %vm1423, %v1669, %v1670
      %v1672 = vrot.slane %v1575, 2
      %v1673 = vsel %vm1423, %v1670, %v1672
      %v1674 = vrot.slane %v1576, 2
      %v1675 = vrot.slane %v1577, 2
      %v1676 = vsel %vm1423, %v1674, %v1675
      %v1677 = vrot.slane %v1578, 2
      %v1678 = vsel %vm1423, %v1675, %v1677
      %v1679 = vrot.slane %v1579, 2
      %v1680 = vrot.slane %v1580, 2
      %v1681 = vsel %vm1423, %v1679, %v1680
      %v1682 = vrot.slane %v1581, 2
      %v1683 = vsel %vm1423, %v1680, %v1682
      %v1684 = vrot.slane %v1582, 2
      %v1685 = vrot.slane %v1583, 2
      %v1686 = vsel %vm1423, %v1684, %v1685
      %v1687 = vrot.slane %v1584, 2
      %v1688 = vsel %vm1423, %v1685, %v1687
      %v1689 = vrot.slane %v1585, 2
      %v1690 = vrot.slane %v1586, 2
      %v1691 = vsel %vm1423, %v1689, %v1690
      %v1692 = vrot.slane %v1587, 2
      %v1693 = vsel %vm1423, %v1690, %v1692
      %v1694 = vrot.slane %v1588, 2
      %v1695 = vrot.slane %v1589, 2
      %v1696 = vsel %vm1423, %v1694, %v1695
      %v1697 = vrot.slane %v1590, 2
      %v1698 = vsel %vm1423, %v1695, %v1697
      %v1699 = vrot.slane %v1591, 2
      %v1700 = vrot.slane %v1592, 2
      %v1701 = vsel %vm1423, %v1699, %v1700
      %v1702 = vrot.slane %v1593, 2
      %v1703 = vsel %vm1423, %v1700, %v1702
      %v1704 = vrot.slane %v1594, 2
      %v1705 = vrot.slane %v1595, 2
      %v1706 = vsel %vm1423, %v1704, %v1705
      %v1707 = vrot.slane %v1596, 2
      %v1708 = vsel %vm1423, %v1705, %v1707
      %v1709 = vrot.slane %v1597, 2
      %v1710 = vrot.slane %v1598, 2
      %v1711 = vsel %vm1423, %v1709, %v1710
      %v1712 = vrot.slane %v1599, 2
      %v1713 = vsel %vm1423, %v1710, %v1712
      %v1714 = vrot.slane %v1600, 2
      %v1715 = vrot.slane %v1601, 2
      %v1716 = vsel %vm1423, %v1714, %v1715
      %v1717 = vrot.slane %v1602, 2
      %v1718 = vsel %vm1423, %v1715, %v1717
      %v1719 = vrot.slane %v1603, 2
      %v1720 = vrot.slane %v1604, 2
      %v1721 = vsel %vm1423, %v1719, %v1720
      %v1722 = vrot.slane %v1605, 2
      %v1723 = vsel %vm1423, %v1720, %v1722
      %v1724 = vrot.slane %v1606, 2
      %v1725 = vrot.slane %v1607, 2
      %v1726 = vsel %vm1423, %v1724, %v1725
      %v1727 = vrot.slane %v1608, 2
      %v1728 = vsel %vm1423, %v1725, %v1727
      %v1729 = vrot.slane %v1609, 2
      %v1730 = vrot.slane %v1610, 2
      %v1731 = vsel %vm1423, %v1729, %v1730
      %v1732 = vrot.slane %v1611, 2
      %v1733 = vsel %vm1423, %v1730, %v1732
      %v1734 = vrot.slane %v1612, 2
      %v1735 = vrot.slane %v1613, 2
      %v1736 = vsel %vm1423, %v1734, %v1735
      %v1737 = vrot.slane %v1614, 2
      %v1738 = vsel %vm1423, %v1735, %v1737
      %v1739 = vrot.slane %v1615, 2
      %v1740 = vrot.slane %v1616, 2
      %v1741 = vsel %vm1423, %v1739, %v1740
      %v1742 = vrot.slane %v1617, 2
      %v1743 = vsel %vm1423, %v1740, %v1742
      %v1744 = vrot.slane %v1618, 2
      %v1745 = vrot.slane %v1619, 2
      %v1746 = vsel %vm1423, %v1744, %v1745
      %v1747 = vrot.slane %v1620, 2
      %v1748 = vsel %vm1423, %v1745, %v1747
      %v1781 = vadd.f32 %v1536, %v1671
      %v1782 = vadd.f32 %v1537, %v1673
      %v1783 = vadd.f32 %v1538, %v1676
      %v1784 = vadd.f32 %v1539, %v1678
      %v1785 = vadd.f32 %v1540, %v1681
      %v1786 = vadd.f32 %v1541, %v1683
      %v1787 = vadd.f32 %v1542, %v1686
      %v1788 = vadd.f32 %v1543, %v1688
      %v1789 = vadd.f32 %v1544, %v1691
      %v1790 = vadd.f32 %v1545, %v1693
      %v1791 = vadd.f32 %v1546, %v1696
      %v1792 = vadd.f32 %v1547, %v1698
      %v1793 = vadd.f32 %v1548, %v1701
      %v1794 = vadd.f32 %v1549, %v1703
      %v1795 = vadd.f32 %v1550, %v1706
      %v1796 = vadd.f32 %v1551, %v1708
      %v1797 = vadd.f32 %v1552, %v1711
      %v1798 = vadd.f32 %v1553, %v1713
      %v1799 = vadd.f32 %v1554, %v1716
      %v1800 = vadd.f32 %v1555, %v1718
      %v1801 = vadd.f32 %v1556, %v1721
      %v1802 = vadd.f32 %v1557, %v1723
      %v1803 = vadd.f32 %v1558, %v1726
      %v1804 = vadd.f32 %v1559, %v1728
      %v1805 = vadd.f32 %v1560, %v1731
      %v1806 = vadd.f32 %v1561, %v1733
      %v1807 = vadd.f32 %v1562, %v1736
      %v1808 = vadd.f32 %v1563, %v1738
      %v1809 = vadd.f32 %v1564, %v1741
      %v1810 = vadd.f32 %v1565, %v1743
      %v1811 = vadd.f32 %v1566, %v1746
      %v1812 = vadd.f32 %v1567, %v1748
      %v1813 = vld [vmem:[%s2 + $0x8] sm:$0x1]
      %v1814 = vlaneseq
      %v1815 = vshrl.u32 %v1814, 7
      %v1816 = vsub.s32 0, %v1815
      %v1817 = vrot.slane %v1813, %v1816
      %v1818 = vmul.f32 %v331, %v1817
      %v1819 = vmul.f32 %v332, %v1817
      %v1820 = vmul.f32 %v333, %v1817
      %v1821 = vmul.f32 %v334, %v1817
      %v1822 = vmul.f32 %v335, %v1817
      %v1823 = vmul.f32 %v336, %v1817
      %v1824 = vmul.f32 %v337, %v1817
      %v1825 = vmul.f32 %v338, %v1817
      %v1826 = vmul.f32 %v339, %v1817
      %v1827 = vmul.f32 %v340, %v1817
      %v1828 = vmul.f32 %v341, %v1817
      %v1829 = vmul.f32 %v342, %v1817
      %v1830 = vmul.f32 %v343, %v1817
      %v1831 = vmul.f32 %v344, %v1817
      %v1832 = vmul.f32 %v345, %v1817
      %v1833 = vmul.f32 %v346, %v1817
      %v1834 = vmul.f32 %v347, %v1817
      %v1835 = vmul.f32 %v348, %v1817
      %v1836 = vmul.f32 %v349, %v1817
      %v1837 = vmul.f32 %v350, %v1817
      %v1838 = vmul.f32 %v351, %v1817
      %v1839 = vmul.f32 %v352, %v1817
      %v1840 = vmul.f32 %v353, %v1817
      %v1841 = vmul.f32 %v354, %v1817
      %v1842 = vmul.f32 %v355, %v1817
      %v1843 = vmul.f32 %v356, %v1817
      %v1844 = vmul.f32 %v357, %v1817
      %v1845 = vmul.f32 %v358, %v1817
      %v1846 = vmul.f32 %v359, %v1817
      %v1847 = vmul.f32 %v360, %v1817
      %v1848 = vmul.f32 %v361, %v1817
      %v1849 = vmul.f32 %v362, %v1817
      %v1850 = vmul.f32 %v363, %v1817
      %v1851 = vmul.f32 %v364, %v1817
      %v1852 = vmul.f32 %v365, %v1817
      %v1853 = vmul.f32 %v366, %v1817
      %v1854 = vmul.f32 %v367, %v1817
      %v1855 = vmul.f32 %v368, %v1817
      %v1856 = vmul.f32 %v369, %v1817
      %v1857 = vmul.f32 %v370, %v1817
      %v1858 = vmul.f32 %v371, %v1817
      %v1859 = vmul.f32 %v372, %v1817
      %v1860 = vmul.f32 %v373, %v1817
      %v1861 = vmul.f32 %v374, %v1817
      %v1862 = vmul.f32 %v375, %v1817
      %v1863 = vmul.f32 %v376, %v1817
      %v1864 = vmul.f32 %v377, %v1817
      %v1865 = vmul.f32 %v378, %v1817
      %v1914 = vrot.slane %v1818, 2
      %v1915 = vrot.slane %v1819, 2
      %v1916 = vsel %vm1423, %v1914, %v1915
      %v1917 = vrot.slane %v1820, 2
      %v1918 = vsel %vm1423, %v1915, %v1917
      %v1919 = vrot.slane %v1821, 2
      %v1920 = vrot.slane %v1822, 2
      %v1921 = vsel %vm1423, %v1919, %v1920
      %v1922 = vrot.slane %v1823, 2
      %v1923 = vsel %vm1423, %v1920, %v1922
      %v1924 = vrot.slane %v1824, 2
      %v1925 = vrot.slane %v1825, 2
      %v1926 = vsel %vm1423, %v1924, %v1925
      %v1927 = vrot.slane %v1826, 2
      %v1928 = vsel %vm1423, %v1925, %v1927
      %v1929 = vrot.slane %v1827, 2
      %v1930 = vrot.slane %v1828, 2
      %v1931 = vsel %vm1423, %v1929, %v1930
      %v1932 = vrot.slane %v1829, 2
      %v1933 = vsel %vm1423, %v1930, %v1932
      %v1934 = vrot.slane %v1830, 2
      %v1935 = vrot.slane %v1831, 2
      %v1936 = vsel %vm1423, %v1934, %v1935
      %v1937 = vrot.slane %v1832, 2
      %v1938 = vsel %vm1423, %v1935, %v1937
      %v1939 = vrot.slane %v1833, 2
      %v1940 = vrot.slane %v1834, 2
      %v1941 = vsel %vm1423, %v1939, %v1940
      %v1942 = vrot.slane %v1835, 2
      %v1943 = vsel %vm1423, %v1940, %v1942
      %v1944 = vrot.slane %v1836, 2
      %v1945 = vrot.slane %v1837, 2
      %v1946 = vsel %vm1423, %v1944, %v1945
      %v1947 = vrot.slane %v1838, 2
      %v1948 = vsel %vm1423, %v1945, %v1947
      %v1949 = vrot.slane %v1839, 2
      %v1950 = vrot.slane %v1840, 2
      %v1951 = vsel %vm1423, %v1949, %v1950
      %v1952 = vrot.slane %v1841, 2
      %v1953 = vsel %vm1423, %v1950, %v1952
      %v1954 = vrot.slane %v1842, 2
      %v1955 = vrot.slane %v1843, 2
      %v1956 = vsel %vm1423, %v1954, %v1955
      %v1957 = vrot.slane %v1844, 2
      %v1958 = vsel %vm1423, %v1955, %v1957
      %v1959 = vrot.slane %v1845, 2
      %v1960 = vrot.slane %v1846, 2
      %v1961 = vsel %vm1423, %v1959, %v1960
      %v1962 = vrot.slane %v1847, 2
      %v1963 = vsel %vm1423, %v1960, %v1962
      %v1964 = vrot.slane %v1848, 2
      %v1965 = vrot.slane %v1849, 2
      %v1966 = vsel %vm1423, %v1964, %v1965
      %v1967 = vrot.slane %v1850, 2
      %v1968 = vsel %vm1423, %v1965, %v1967
      %v1969 = vrot.slane %v1851, 2
      %v1970 = vrot.slane %v1852, 2
      %v1971 = vsel %vm1423, %v1969, %v1970
      %v1972 = vrot.slane %v1853, 2
      %v1973 = vsel %vm1423, %v1970, %v1972
      %v1974 = vrot.slane %v1854, 2
      %v1975 = vrot.slane %v1855, 2
      %v1976 = vsel %vm1423, %v1974, %v1975
      %v1977 = vrot.slane %v1856, 2
      %v1978 = vsel %vm1423, %v1975, %v1977
      %v1979 = vrot.slane %v1857, 2
      %v1980 = vrot.slane %v1858, 2
      %v1981 = vsel %vm1423, %v1979, %v1980
      %v1982 = vrot.slane %v1859, 2
      %v1983 = vsel %vm1423, %v1980, %v1982
      %v1984 = vrot.slane %v1860, 2
      %v1985 = vrot.slane %v1861, 2
      %v1986 = vsel %vm1423, %v1984, %v1985
      %v1987 = vrot.slane %v1862, 2
      %v1988 = vsel %vm1423, %v1985, %v1987
      %v1989 = vrot.slane %v1863, 2
      %v1990 = vrot.slane %v1864, 2
      %v1991 = vsel %vm1423, %v1989, %v1990
      %v1992 = vrot.slane %v1865, 2
      %v1993 = vsel %vm1423, %v1990, %v1992
      %v2026 = vadd.f32 %v1781, %v1916
      %v2027 = vadd.f32 %v1782, %v1918
      %v2028 = vadd.f32 %v1783, %v1921
      %v2029 = vadd.f32 %v1784, %v1923
      %v2030 = vadd.f32 %v1785, %v1926
      %v2031 = vadd.f32 %v1786, %v1928
      %v2032 = vadd.f32 %v1787, %v1931
      %v2033 = vadd.f32 %v1788, %v1933
      %v2034 = vadd.f32 %v1789, %v1936
      %v2035 = vadd.f32 %v1790, %v1938
      %v2036 = vadd.f32 %v1791, %v1941
      %v2037 = vadd.f32 %v1792, %v1943
      %v2038 = vadd.f32 %v1793, %v1946
      %v2039 = vadd.f32 %v1794, %v1948
      %v2040 = vadd.f32 %v1795, %v1951
      %v2041 = vadd.f32 %v1796, %v1953
      %v2042 = vadd.f32 %v1797, %v1956
      %v2043 = vadd.f32 %v1798, %v1958
      %v2044 = vadd.f32 %v1799, %v1961
      %v2045 = vadd.f32 %v1800, %v1963
      %v2046 = vadd.f32 %v1801, %v1966
      %v2047 = vadd.f32 %v1802, %v1968
      %v2048 = vadd.f32 %v1803, %v1971
      %v2049 = vadd.f32 %v1804, %v1973
      %v2050 = vadd.f32 %v1805, %v1976
      %v2051 = vadd.f32 %v1806, %v1978
      %v2052 = vadd.f32 %v1807, %v1981
      %v2053 = vadd.f32 %v1808, %v1983
      %v2054 = vadd.f32 %v1809, %v1986
      %v2055 = vadd.f32 %v1810, %v1988
      %v2056 = vadd.f32 %v1811, %v1991
      %v2057 = vadd.f32 %v1812, %v1993
      %v2058 = vld [vmem:[%s3] sm:$0x1]
      %v2060 = vlaneseq
      %v2061 = vshrl.u32 %v2060, 7
      %v2062 = vsub.s32 0, %v2061
      %v2063 = vrot.slane %v2058, %v2062
      %v2065 = vadd.f32 %v2026, %v2063
      %v2066 = vadd.f32 %v2027, %v2063
      %v2067 = vadd.f32 %v2028, %v2063
      %v2068 = vadd.f32 %v2029, %v2063
      %v2069 = vadd.f32 %v2030, %v2063
      %v2070 = vadd.f32 %v2031, %v2063
      %v2071 = vadd.f32 %v2032, %v2063
      %v2072 = vadd.f32 %v2033, %v2063
      %v2073 = vadd.f32 %v2034, %v2063
      %v2074 = vadd.f32 %v2035, %v2063
      %v2075 = vadd.f32 %v2036, %v2063
      %v2076 = vadd.f32 %v2037, %v2063
      %v2077 = vadd.f32 %v2038, %v2063
      %v2078 = vadd.f32 %v2039, %v2063
      %v2079 = vadd.f32 %v2040, %v2063
      %v2080 = vadd.f32 %v2041, %v2063
      %v2081 = vadd.f32 %v2042, %v2063
      %v2082 = vadd.f32 %v2043, %v2063
      %v2083 = vadd.f32 %v2044, %v2063
      %v2084 = vadd.f32 %v2045, %v2063
      %v2085 = vadd.f32 %v2046, %v2063
      %v2086 = vadd.f32 %v2047, %v2063
      %v2087 = vadd.f32 %v2048, %v2063
      %v2088 = vadd.f32 %v2049, %v2063
      %v2089 = vadd.f32 %v2050, %v2063
      %v2090 = vadd.f32 %v2051, %v2063
      %v2091 = vadd.f32 %v2052, %v2063
      %v2092 = vadd.f32 %v2053, %v2063
      %v2093 = vadd.f32 %v2054, %v2063
      %v2094 = vadd.f32 %v2055, %v2063
      %v2095 = vadd.f32 %v2056, %v2063
      %v2096 = vadd.f32 %v2057, %v2063
      %v2097 = vld [vmem:[%s4] sm:$0xf]
      %v2098 = vld [vmem:[%s5] sm:$0x1]
      %v2100 = vlaneseq
      %v2101 = vshrl.u32 %v2100, 7
      %v2102 = vsub.s32 0, %v2101
      %v2103 = vrot.slane %v2098, %v2102
      %vm2105 = vcmask 31744
      %v2107 = vsel %vm2105, %v2065, 0
      %v2110 = vsel %vm2105, %v2066, 0
      %v2113 = vsel %vm2105, %v2067, 0
      %v2116 = vsel %vm2105, %v2068, 0
      %v2119 = vsel %vm2105, %v2069, 0
      %v2122 = vsel %vm2105, %v2070, 0
      %v2125 = vsel %vm2105, %v2071, 0
      %v2128 = vsel %vm2105, %v2072, 0
      %v2131 = vsel %vm2105, %v2073, 0
      %v2134 = vsel %vm2105, %v2074, 0
      %v2137 = vsel %vm2105, %v2075, 0
      %v2140 = vsel %vm2105, %v2076, 0
      %v2143 = vsel %vm2105, %v2077, 0
      %v2146 = vsel %vm2105, %v2078, 0
      %v2149 = vsel %vm2105, %v2079, 0
      %v2152 = vsel %vm2105, %v2080, 0
      %v2155 = vsel %vm2105, %v2081, 0
      %v2158 = vsel %vm2105, %v2082, 0
      %v2161 = vsel %vm2105, %v2083, 0
      %v2164 = vsel %vm2105, %v2084, 0
      %v2167 = vsel %vm2105, %v2085, 0
      %v2170 = vsel %vm2105, %v2086, 0
      %v2173 = vsel %vm2105, %v2087, 0
      %v2176 = vsel %vm2105, %v2088, 0
      %v2179 = vsel %vm2105, %v2089, 0
      %v2182 = vsel %vm2105, %v2090, 0
      %v2185 = vsel %vm2105, %v2091, 0
      %v2188 = vsel %vm2105, %v2092, 0
      %v2191 = vsel %vm2105, %v2093, 0
      %v2194 = vsel %vm2105, %v2094, 0
      %v2197 = vsel %vm2105, %v2095, 0
      %v2200 = vsel %vm2105, %v2096, 0
      %vm2202 = vcmask 1043456
      %v2204 = vsel %vm2202, %v2097, 0
      %2206 = vmatprep.subr.mxu0 0.0
      %2207 = vmatpush1.msra.mxu0 %v2204
      %2208 = vmatprep.subr.mxu0 0.0
      %2209 = vmatpush1.msra.mxu0 0.0
      %2210 = vmatprep.subr.mxu0 0.0
      %2211 = vmatpush1.msra.mxu0 0.0
      %2212 = vmatprep.subr.mxu0 0.0
      %2213 = vmatpush1.msra.mxu0 0.0
      %2214 = vmatprep.subr.mxu0 0.0
      %2215 = vmatpush1.msra.mxu0 0.0
      %2216 = vmatprep.subr.mxu0 0.0
      %2217 = vmatpush1.msra.mxu0 0.0
      %2218 = vmatprep.subr.mxu0 0.0
      %2219 = vmatpush1.msra.mxu0 0.0
      %2220 = vmatprep.subr.mxu0 0.0
      %2221 = vmatpush1.msra.mxu0 0.0
      %2222 = vmatprep.subr.mxu0 0.0
      %2223 = vmatpush1.msra.mxu0 0.0
      %2224 = vmatprep.subr.mxu0 0.0
      %2225 = vmatpush1.msra.mxu0 0.0
      %2226 = vmatprep.subr.mxu0 0.0
      %2227 = vmatpush1.msra.mxu0 0.0
      %2228 = vmatprep.subr.mxu0 0.0
      %2229 = vmatpush1.msra.mxu0 0.0
      %2230 = vmatprep.subr.mxu0 0.0
      %2231 = vmatpush1.msra.mxu0 0.0
      %2232 = vmatprep.subr.mxu0 0.0
      %2233 = vmatpush1.msra.mxu0 0.0
      %2234 = vmatprep.subr.mxu0 0.0
      %2235 = vmatpush1.msra.mxu0 0.0
      %2236 = vmatprep.subr.mxu0 0.0
      %2237 = vmatpush1.msra.mxu0 0.0
      %2238 = vmatprep.subr.mxu0 0.0
      %2239 = vmatpush1.msra.mxu0 0.0
      %2240 = vmatprep.subr.mxu0 0.0
      %2241 = vmatpush1.msra.mxu0 0.0
      %2242 = vmatprep.subr.mxu0 0.0
      %2243 = vmatpush1.msra.mxu0 0.0
      %2244 = vmatprep.subr.mxu0 0.0
      %2245 = vmatpush1.msra.mxu0 0.0
      %2246 = vmatprep.subr.mxu0 0.0
      %2247 = vmatpush1.msra.mxu0 0.0
      %2248 = vmatprep.subr.mxu0 0.0
      %2249 = vmatpush1.msra.mxu0 0.0
      %2250 = vmatprep.subr.mxu0 0.0
      %2251 = vmatpush1.msra.mxu0 0.0
      %2252 = vmatprep.subr.mxu0 0.0
      %2253 = vmatpush1.msra.mxu0 0.0
      %2254 = vmatprep.subr.mxu0 0.0
      %2255 = vmatpush1.msra.mxu0 0.0
      %2256 = vmatprep.subr.mxu0 0.0
      %2257 = vmatpush1.msra.mxu0 0.0
      %2258 = vmatprep.subr.mxu0 0.0
      %2259 = vmatpush1.msra.mxu0 0.0
      %2260 = vmatprep.subr.mxu0 0.0
      %2261 = vmatpush1.msra.mxu0 0.0
      %2262 = vmatprep.subr.mxu0 0.0
      %2263 = vmatpush1.msra.mxu0 0.0
      %2264 = vmatprep.subr.mxu0 0.0
      %2265 = vmatpush1.msra.mxu0 0.0
      %2266 = vmatprep.subr.mxu0 0.0
      %2267 = vmatpush1.msra.mxu0 0.0
      %2268 = vmatprep.subr.mxu0 0.0
      %2269 = vmatpush1.msra.mxu0 0.0
      %2270 = vmatprep.mubr.f32.mxu0 0.0
      %2271 = vmatmul.mubr.f32.gmra.mrb[0].mxu0 %v2107
      %v2272 = vpop.f32.mrb[0].mxu0
      %v2273 = vadd.f32 %v2103, %v2272
      %v2274 = vpop.f32.mrb[0].mxu0
      %2275 = vmatprep.mubr.f32.mxu0 0.0
      %2276 = vmatmul.mubr.f32.gmra.mrb[0].mxu0 %v2110
      %v2277 = vpop.f32.mrb[0].mxu0
      %v2278 = vadd.f32 %v2103, %v2277
      %v2279 = vpop.f32.mrb[0].mxu0
      %2280 = vmatprep.mubr.f32.mxu0 0.0
      %2281 = vmatmul.mubr.f32.gmra.mrb[0].mxu0 %v2113
      %v2282 = vpop.f32.mrb[0].mxu0
      %v2283 = vadd.f32 %v2103, %v2282
      %v2284 = vpop.f32.mrb[0].mxu0
      %2285 = vmatprep.mubr.f32.mxu0 0.0
      %2286 = vmatmul.mubr.f32.gmra.mrb[0].mxu0 %v2116
      %v2287 = vpop.f32.mrb[0].mxu0
      %v2288 = vadd.f32 %v2103, %v2287
      %v2289 = vpop.f32.mrb[0].mxu0
      %2290 = vmatprep.mubr.f32.mxu0 0.0
      %2291 = vmatmul.mubr.f32.gmra.mrb[0].mxu0 %v2119
      %v2292 = vpop.f32.mrb[0].mxu0
      %v2293 = vadd.f32 %v2103, %v2292
      %v2294 = vpop.f32.mrb[0].mxu0
      %2295 = vmatprep.mubr.f32.mxu0 0.0
      %2296 = vmatmul.mubr.f32.gmra.mrb[0].mxu0 %v2122
      %v2297 = vpop.f32.mrb[0].mxu0
      %v2298 = vadd.f32 %v2103, %v2297
      %v2299 = vpop.f32.mrb[0].mxu0
      %2300 = vmatprep.mubr.f32.mxu0 0.0
      %2301 = vmatmul.mubr.f32.gmra.mrb[0].mxu0 %v2125
      %v2302 = vpop.f32.mrb[0].mxu0
      %v2303 = vadd.f32 %v2103, %v2302
      %v2304 = vpop.f32.mrb[0].mxu0
      %2305 = vmatprep.mubr.f32.mxu0 0.0
      %2306 = vmatmul.mubr.f32.gmra.mrb[0].mxu0 %v2128
      %v2307 = vpop.f32.mrb[0].mxu0
      %v2308 = vadd.f32 %v2103, %v2307
      %v2309 = vpop.f32.mrb[0].mxu0
      %2310 = vmatprep.mubr.f32.mxu0 0.0
      %2311 = vmatmul.mubr.f32.gmra.mrb[0].mxu0 %v2131
      %v2312 = vpop.f32.mrb[0].mxu0
      %v2313 = vadd.f32 %v2103, %v2312
      %v2314 = vpop.f32.mrb[0].mxu0
      %2315 = vmatprep.mubr.f32.mxu0 0.0
      %2316 = vmatmul.mubr.f32.gmra.mrb[0].mxu0 %v2134
      %v2317 = vpop.f32.mrb[0].mxu0
      %v2318 = vadd.f32 %v2103, %v2317
      %v2319 = vpop.f32.mrb[0].mxu0
      %2320 = vmatprep.mubr.f32.mxu0 0.0
      %2321 = vmatmul.mubr.f32.gmra.mrb[0].mxu0 %v2137
      %v2322 = vpop.f32.mrb[0].mxu0
      %v2323 = vadd.f32 %v2103, %v2322
      %v2324 = vpop.f32.mrb[0].mxu0
      %2325 = vmatprep.mubr.f32.mxu0 0.0
      %2326 = vmatmul.mubr.f32.gmra.mrb[0].mxu0 %v2140
      %v2327 = vpop.f32.mrb[0].mxu0
      %v2328 = vadd.f32 %v2103, %v2327
      %v2329 = vpop.f32.mrb[0].mxu0
      %2330 = vmatprep.mubr.f32.mxu0 0.0
      %2331 = vmatmul.mubr.f32.gmra.mrb[0].mxu0 %v2143
      %v2332 = vpop.f32.mrb[0].mxu0
      %v2333 = vadd.f32 %v2103, %v2332
      %v2334 = vpop.f32.mrb[0].mxu0
      %2335 = vmatprep.mubr.f32.mxu0 0.0
      %2336 = vmatmul.mubr.f32.gmra.mrb[0].mxu0 %v2146
      %v2337 = vpop.f32.mrb[0].mxu0
      %v2338 = vadd.f32 %v2103, %v2337
      %v2339 = vpop.f32.mrb[0].mxu0
      %2340 = vmatprep.mubr.f32.mxu0 0.0
      %2341 = vmatmul.mubr.f32.gmra.mrb[0].mxu0 %v2149
      %v2342 = vpop.f32.mrb[0].mxu0
      %v2343 = vadd.f32 %v2103, %v2342
      %v2344 = vpop.f32.mrb[0].mxu0
      %2345 = vmatprep.mubr.f32.mxu0 0.0
      %2346 = vmatmul.mubr.f32.gmra.mrb[0].mxu0 %v2152
      %v2347 = vpop.f32.mrb[0].mxu0
      %v2348 = vadd.f32 %v2103, %v2347
      %v2349 = vpop.f32.mrb[0].mxu0
      %2350 = vmatprep.mubr.f32.mxu0 0.0
      %2351 = vmatmul.mubr.f32.gmra.mrb[0].mxu0 %v2155
      %v2352 = vpop.f32.mrb[0].mxu0
      %v2353 = vadd.f32 %v2103, %v2352
      %v2354 = vpop.f32.mrb[0].mxu0
      %2355 = vmatprep.mubr.f32.mxu0 0.0
      %2356 = vmatmul.mubr.f32.gmra.mrb[0].mxu0 %v2158
      %v2357 = vpop.f32.mrb[0].mxu0
      %v2358 = vadd.f32 %v2103, %v2357
      %v2359 = vpop.f32.mrb[0].mxu0
      %2360 = vmatprep.mubr.f32.mxu0 0.0
      %2361 = vmatmul.mubr.f32.gmra.mrb[0].mxu0 %v2161
      %v2362 = vpop.f32.mrb[0].mxu0
      %v2363 = vadd.f32 %v2103, %v2362
      %v2364 = vpop.f32.mrb[0].mxu0
      %2365 = vmatprep.mubr.f32.mxu0 0.0
      %2366 = vmatmul.mubr.f32.gmra.mrb[0].mxu0 %v2164
      %v2367 = vpop.f32.mrb[0].mxu0
      %v2368 = vadd.f32 %v2103, %v2367
      %v2369 = vpop.f32.mrb[0].mxu0
      %2370 = vmatprep.mubr.f32.mxu0 0.0
      %2371 = vmatmul.mubr.f32.gmra.mrb[0].mxu0 %v2167
      %v2372 = vpop.f32.mrb[0].mxu0
      %v2373 = vadd.f32 %v2103, %v2372
      %v2374 = vpop.f32.mrb[0].mxu0
      %2375 = vmatprep.mubr.f32.mxu0 0.0
      %2376 = vmatmul.mubr.f32.gmra.mrb[0].mxu0 %v2170
      %v2377 = vpop.f32.mrb[0].mxu0
      %v2378 = vadd.f32 %v2103, %v2377
      %v2379 = vpop.f32.mrb[0].mxu0
      %2380 = vmatprep.mubr.f32.mxu0 0.0
      %2381 = vmatmul.mubr.f32.gmra.mrb[0].mxu0 %v2173
      %v2382 = vpop.f32.mrb[0].mxu0
      %v2383 = vadd.f32 %v2103, %v2382
      %v2384 = vpop.f32.mrb[0].mxu0
      %2385 = vmatprep.mubr.f32.mxu0 0.0
      %2386 = vmatmul.mubr.f32.gmra.mrb[0].mxu0 %v2176
      %v2387 = vpop.f32.mrb[0].mxu0
      %v2388 = vadd.f32 %v2103, %v2387
      %v2389 = vpop.f32.mrb[0].mxu0
      %2390 = vmatprep.mubr.f32.mxu0 0.0
      %2391 = vmatmul.mubr.f32.gmra.mrb[0].mxu0 %v2179
      %v2392 = vpop.f32.mrb[0].mxu0
      %v2393 = vadd.f32 %v2103, %v2392
      %v2394 = vpop.f32.mrb[0].mxu0
      %2395 = vmatprep.mubr.f32.mxu0 0.0
      %2396 = vmatmul.mubr.f32.gmra.mrb[0].mxu0 %v2182
      %v2397 = vpop.f32.mrb[0].mxu0
      %v2398 = vadd.f32 %v2103, %v2397
      %v2399 = vpop.f32.mrb[0].mxu0
      %2400 = vmatprep.mubr.f32.mxu0 0.0
      %2401 = vmatmul.mubr.f32.gmra.mrb[0].mxu0 %v2185
      %v2402 = vpop.f32.mrb[0].mxu0
      %v2403 = vadd.f32 %v2103, %v2402
      %v2404 = vpop.f32.mrb[0].mxu0
      %2405 = vmatprep.mubr.f32.mxu0 0.0
      %2406 = vmatmul.mubr.f32.gmra.mrb[0].mxu0 %v2188
      %v2407 = vpop.f32.mrb[0].mxu0
      %v2408 = vadd.f32 %v2103, %v2407
      %v2409 = vpop.f32.mrb[0].mxu0
      %2410 = vmatprep.mubr.f32.mxu0 0.0
      %2411 = vmatmul.mubr.f32.gmra.mrb[0].mxu0 %v2191
      %v2412 = vpop.f32.mrb[0].mxu0
      %v2413 = vadd.f32 %v2103, %v2412
      %v2414 = vpop.f32.mrb[0].mxu0
      %2415 = vmatprep.mubr.f32.mxu0 0.0
      %2416 = vmatmul.mubr.f32.gmra.mrb[0].mxu0 %v2194
      %v2417 = vpop.f32.mrb[0].mxu0
      %v2418 = vadd.f32 %v2103, %v2417
      %v2419 = vpop.f32.mrb[0].mxu0
      %2420 = vmatprep.mubr.f32.mxu0 0.0
      %2421 = vmatmul.mubr.f32.gmra.mrb[0].mxu0 %v2197
      %v2422 = vpop.f32.mrb[0].mxu0
      %v2423 = vadd.f32 %v2103, %v2422
      %v2424 = vpop.f32.mrb[0].mxu0
      %2425 = vmatprep.mubr.f32.mxu0 0.0
      %2426 = vmatmul.mubr.f32.gmra.mrb[0].mxu0 %v2200
      %v2427 = vpop.f32.mrb[0].mxu0
      %v2428 = vadd.f32 %v2103, %v2427
      %v2429 = vpop.f32.mrb[0].mxu0
      %2430 = vdwg.mxu0
      %vm2431 = vcmask 64512
      %2432 = vst.msk [vmem:[%s323] sm:$0xff] %vm2431, %v2273
      %2433 = vst.msk [vmem:[%s323 + $0x8] sm:$0xff] %vm2431, %v2278
      %2434 = vst.msk [vmem:[%s323 + $0x10] sm:$0xff] %vm2431, %v2283
      %2435 = vst.msk [vmem:[%s323 + $0x18] sm:$0xff] %vm2431, %v2288
      %2436 = vst.msk [vmem:[%s323 + $0x20] sm:$0xff] %vm2431, %v2293
      %2437 = vst.msk [vmem:[%s323 + $0x28] sm:$0xff] %vm2431, %v2298
      %2438 = vst.msk [vmem:[%s323 + $0x30] sm:$0xff] %vm2431, %v2303
      %2439 = vst.msk [vmem:[%s323 + $0x38] sm:$0xff] %vm2431, %v2308
      %2440 = vst.msk [vmem:[%s323 + $0x40] sm:$0xff] %vm2431, %v2313
      %2441 = vst.msk [vmem:[%s323 + $0x48] sm:$0xff] %vm2431, %v2318
      %2442 = vst.msk [vmem:[%s323 + $0x50] sm:$0xff] %vm2431, %v2323
      %2443 = vst.msk [vmem:[%s323 + $0x58] sm:$0xff] %vm2431, %v2328
      %2444 = vst.msk [vmem:[%s323 + $0x60] sm:$0xff] %vm2431, %v2333
      %2445 = vst.msk [vmem:[%s323 + $0x68] sm:$0xff] %vm2431, %v2338
      %2446 = vst.msk [vmem:[%s323 + $0x70] sm:$0xff] %vm2431, %v2343
      %2447 = vst.msk [vmem:[%s323 + $0x78] sm:$0xff] %vm2431, %v2348
      %2448 = vst.msk [vmem:[%s323 + $0x80] sm:$0xff] %vm2431, %v2353
      %2449 = vst.msk [vmem:[%s323 + $0x88] sm:$0xff] %vm2431, %v2358
      %2450 = vst.msk [vmem:[%s323 + $0x90] sm:$0xff] %vm2431, %v2363
      %2451 = vst.msk [vmem:[%s323 + $0x98] sm:$0xff] %vm2431, %v2368
      %2452 = vst.msk [vmem:[%s323 + $0xa0] sm:$0xff] %vm2431, %v2373
      %2453 = vst.msk [vmem:[%s323 + $0xa8] sm:$0xff] %vm2431, %v2378
      %2454 = vst.msk [vmem:[%s323 + $0xb0] sm:$0xff] %vm2431, %v2383
      %2455 = vst.msk [vmem:[%s323 + $0xb8] sm:$0xff] %vm2431, %v2388
      %2456 = vst.msk [vmem:[%s323 + $0xc0] sm:$0xff] %vm2431, %v2393
      %2457 = vst.msk [vmem:[%s323 + $0xc8] sm:$0xff] %vm2431, %v2398
      %2458 = vst.msk [vmem:[%s323 + $0xd0] sm:$0xff] %vm2431, %v2403
      %2459 = vst.msk [vmem:[%s323 + $0xd8] sm:$0xff] %vm2431, %v2408
      %2460 = vst.msk [vmem:[%s323 + $0xe0] sm:$0xff] %vm2431, %v2413
      %2461 = vst.msk [vmem:[%s323 + $0xe8] sm:$0xff] %vm2431, %v2418
      %2462 = vst.msk [vmem:[%s323 + $0xf0] sm:$0xff] %vm2431, %v2423
      %2463 = vst.msk [vmem:[%s323 + $0xf8] sm:$0xff] %vm2431, %v2428
      %s2464 = smul.u32 16, %s22
      %p2465 = scmp.lt.s32.totalorder %s21, 1
      %s2466 = scalar_select %p2465, %s21, 1
      %p2467 = scmp.lt.s32.totalorder %s2464, 15
      %s2468 = scalar_select %p2467, %s2464, 15
      %s2469 = smul.addr %s2468, 2
      %s2470 = smul.addr %s2466, 32
      %s2471 = sadd.s32 %s2469, %s2470
      %s2472 = smul.addr %s2471, 8
      %s2473 = scalar_lea.vmem %s6, %s2472
      // Predicated region
      $region45: #{tpu_custom_call.1} parent=43 // pred_check
        %p2474 = pneg %p189
      $region46: #{tpu_custom_call.1} parent=43 // pred_check_branch
        %2476 = sbr.rel (%p2474) target = $region48
      $region47: #{tpu_custom_call.1} parent=43 // pred_region
        %s2477 = smul.u32 16, %s22
      $region48: #{tpu_custom_call.1} parent=43 // pred_fallthru
        _
    $region44: #{tpu_custom_call.1} parent=5 // pred_fallthru
      _
    %p2478 = scmp.le.s32.totalorder 2, %s12
    // Predicated region
    $region49: #{tpu_custom_call.1} parent=5 // pred_check
      %p2479 = pneg %p2478
    $region50: #{tpu_custom_call.1} parent=5 // pred_check_branch
      %2481 = sbr.rel (%p2479) target = $region52
    $region51: #{tpu_custom_call.1} parent=5 // pred_region
      %s2482 = ssub.s32 %s12, 2
      // Predicated region
      $region53: #{tpu_custom_call.1} parent=51 // pred_check
        %p2483 = pneg %p195
      $region54: #{tpu_custom_call.1} parent=51 // pred_check_branch
        %2485 = sbr.rel (%p2483) target = $region56
      $region55: #{tpu_custom_call.1} parent=51 // pred_region
        %s2486 = smul.u32 16, %s24
        %p2487 = scmp.lt.s32.totalorder %s23, 1
        %s2488 = scalar_select %p2487, %s23, 1
        %p2489 = scmp.lt.s32.totalorder %s2486, 15
        %s2490 = scalar_select %p2489, %s2486, 15
        %s2491 = smul.addr %s2490, 2
        %s2492 = smul.addr %s2488, 32
        %s2493 = sadd.s32 %s2491, %s2492
        %s2494 = smul.addr %s2493, 8
        %s2495 = scalar_lea.vmem %s6, %s2494
      $region56: #{tpu_custom_call.1} parent=51 // pred_fallthru
        _
    $region52: #{tpu_custom_call.1} parent=5 // pred_fallthru
      _
  $region6: #{tpu_custom_call.1} parent=0 // loop_footer
    %s16 = sadd.s32 1, %s12
  $region7: #{tpu_custom_call.1} parent=0 // loop_footer_branch
    %11 = sbr.rel target = $region3
  $region8: #{tpu_custom_call.1} parent=0 // loop_exit
    _

</llo_original>
